<compile_context>
chip_gen: v7x
topology: tpu7x:2x2x1
jax: 0.10.0
libtpu: 0.0.40
codegen_flags: <defaults>
</compile_context>

<pallas_src>
import functools

import jax
import jax.numpy as jnp
from jax.experimental import pallas as pl
from jax.experimental.pallas import tpu as pltpu

EPS = 1e-5  # torch.nn.LayerNorm default


def _round_up(n, m):
    return ((n + m - 1) // m) * m


# ----------------------------------------------------------------------------
# Hardware / capability queries
# ----------------------------------------------------------------------------
def _per_core_vmem_bytes():
    """Best-effort per-TensorCore VMEM budget.

    pltpu.get_tpu_info() may report chip-level capacity; only trust it fully
    on known single-core 128 MiB parts (v5e / v6e), otherwise clamp to the
    64 MiB per-core budget of v7x."""
    default = 64 << 20
    try:
        cap = int(pltpu.get_tpu_info().vmem_capacity_bytes)
    except Exception:
        return default
    kind = ""
    try:
        kind = jax.devices()[0].device_kind.lower()
    except Exception:
        pass
    if any(t in kind for t in ("v5 lite", "v5e", "v6 lite", "v6e")):
        return max(min(cap, 128 << 20), 32 << 20)
    return max(min(cap, default), 32 << 20)


_SINGLE_BUFFER_OK = None


def _single_buffer_supported():
    """One-off probe: does this JAX build accept pipeline_mode=pl.Buffered(1)
    on a constant-index BlockSpec?  (Explicit capability detection — the real
    kernel is never wrapped in a try/except.)"""
    global _SINGLE_BUFFER_OK
    if _SINGLE_BUFFER_OK is None:
        def _probe(a_ref, w_ref, o_ref):
            o_ref[...] = a_ref[...] + w_ref[...]

        try:
            a = jnp.zeros((16, 128), jnp.float32)
            w = jnp.ones((8, 128), jnp.float32)
            f = pl.pallas_call(
                _probe,
                out_shape=jax.ShapeDtypeStruct((16, 128), jnp.float32),
                grid=(2,),
                in_specs=[
                    pl.BlockSpec((8, 128), lambda i: (i, 0)),
                    pl.BlockSpec((8, 128), lambda i: (0, 0),
                                 pipeline_mode=pl.Buffered(1)),
                ],
                out_specs=pl.BlockSpec((8, 128), lambda i: (i, 0)),
            )
            jax.block_until_ready(f(a, w))
            _SINGLE_BUFFER_OK = True
        except Exception:
            _SINGLE_BUFFER_OK = False
    return _SINGLE_BUFFER_OK


# ----------------------------------------------------------------------------
# Kernels
# ----------------------------------------------------------------------------
def _layernorm2(y, v2, d_model):
    """LayerNorm over the (possibly zero-padded) last axis with the *real*
    d_model divisor.  One-pass stats are exact here because padded columns of
    y / gamma / beta are zero; clamp var>=0 against cancellation."""
    inv_n = 1.0 / float(d_model)
    mu = jnp.sum(y, axis=-1, keepdims=True) * inv_n
    var = jnp.maximum(jnp.sum(y * y, axis=-1, keepdims=True) * inv_n - mu * mu, 0.0)
    return (y - mu) * jax.lax.rsqrt(var + EPS) * v2[1:2, :] + v2[2:3, :]


def ffn_fused_kernel(x_ref, w1_ref, v1_ref, w2_ref, v2_ref, o_ref,
                     *, d_ff, d_model):
    """Fused-fc1 path (requires d_ff % 128 == 0 so the GLU split is a free,
    lane-aligned static slice)."""
    x_f32 = x_ref[...].astype(jnp.float32)          # residual path
    x_mm = x_f32.astype(jnp.bfloat16)                # MXU operand

    v1 = v1_ref[...]                                  # (3, 2*d_ff): b1, g1, be1
    v2 = v2_ref[...]                                  # (3, d_model): b2, g2, be2

    # fc1: one MXU pass over the full 2*d_ff output width.
    h = jnp.dot(x_mm, w1_ref[...], preferred_element_type=jnp.float32) + v1[0:1, :]

    # norm1 over 2*d_ff: two-pass (centered) variance -> >= 0 by construction.
    mu1 = jnp.mean(h, axis=-1, keepdims=True)
    hc = h - mu1
    var1 = jnp.mean(hc * hc, axis=-1, keepdims=True)
    ln1 = hc * jax.lax.rsqrt(var1 + EPS) * v1[1:2, :] + v1[2:3, :]

    # GLU split — lane-aligned static slices.
    a = ln1[:, :d_ff]
    gate = ln1[:, d_ff:]
    glu = jax.nn.sigmoid(gate) * a

    # fc2
    y = jnp.dot(glu.astype(jnp.bfloat16), w2_ref[...],
                preferred_element_type=jnp.float32) + v2[0:1, :]

    # norm2 + residual
    y = _layernorm2(y, v2, d_model)
    o_ref[...] = (x_f32 + y).astype(o_ref.dtype)


def ffn_split_kernel(x_ref, w1a_ref, w1b_ref, v1_ref, w2_ref, v2_ref, o_ref,
                     *, d_ff, d_model):
    """Fallback path for d_ff not a multiple of 128: fc1/norm1 parameters are
    pre-split into (value, gate) halves host-side so the kernel never slices
    across a lane boundary."""
    x_f32 = x_ref[...].astype(jnp.float32)
    x_mm = x_f32.astype(jnp.bfloat16)

    v1 = v1_ref[...]                                  # (6, d_ff): b1a g1a be1a b1b g1b be1b
    v2 = v2_ref[...]                                  # (3, d_model)

    ha = jnp.dot(x_mm, w1a_ref[...], preferred_element_type=jnp.float32) + v1[0:1, :]
    hg = jnp.dot(x_mm, w1b_ref[...], preferred_element_type=jnp.float32) + v1[3:4, :]

    inv_n1 = 1.0 / float(2 * d_ff)
    mu1 = (jnp.sum(ha, axis=-1, keepdims=True) +
           jnp.sum(hg, axis=-1, keepdims=True)) * inv_n1
    hca = ha - mu1
    hcg = hg - mu1
    var1 = (jnp.sum(hca * hca, axis=-1, keepdims=True) +
            jnp.sum(hcg * hcg, axis=-1, keepdims=True)) * inv_n1
    inv1 = jax.lax.rsqrt(var1 + EPS)

    a = hca * inv1 * v1[1:2, :] + v1[2:3, :]
    gate = hcg * inv1 * v1[4:5, :] + v1[5:6, :]
    glu = jax.nn.sigmoid(gate) * a

    y = jnp.dot(glu.astype(jnp.bfloat16), w2_ref[...],
                preferred_element_type=jnp.float32) + v2[0:1, :]
    y = _layernorm2(y, v2, d_model)
    o_ref[...] = (x_f32 + y).astype(o_ref.dtype)


# ----------------------------------------------------------------------------
# Tile / VMEM sizing (generation aware, weight-footprint aware)
# ----------------------------------------------------------------------------
def _default_row_tile(d_model_p, d_ff, weight_buffers, io_bytes):
    vmem = _per_core_vmem_bytes()
    # Resident parameter footprint: bf16 W1 + W2 plus f32 LN/bias vectors
    # (sublane-padded to 8 rows), times the number of pipeline buffers.
    w_bytes = 2 * (d_model_p * 2 * d_ff + d_ff * d_model_p)
    vec_bytes = 4 * 8 * (2 * d_ff + d_model_p)
    resident = weight_buffers * (w_bytes + vec_bytes)
    # Per-row bytes: double-buffered x/out I/O plus live f32 intermediates
    # (h, centered h, glu, x_f32, y  ->  ~5*d_ff + 3*d_model per row).
    per_row = (2 * 2 * io_bytes * d_model_p
               + 4 * (5 * d_ff + 3 * d_model_p))
    budget = max(vmem - resident - (8 << 20), vmem // 8)
    tm = (budget // max(per_row, 1)) // 256 * 256
    # TODO(synk): when `resident` alone exceeds the budget (huge FFN on v7x),
    # a d_ff-tiled reduction grid is needed instead of clamping to 256 rows.
    return int(min(1024, max(256, tm)))


def _vmem_limit_bytes(tm, d_model_p, d_ff, weight_buffers, io_bytes):
    per_core = _per_core_vmem_bytes()
    w = weight_buffers * (2 * (d_model_p * 2 * d_ff + d_ff * d_model_p)
                          + 4 * 8 * (2 * d_ff + d_model_p))
    io = 2 * 2 * io_bytes * tm * d_model_p
    act = 4 * tm * (5 * d_ff + 3 * d_model_p)
    need = w + io + act
    cap = per_core - (8 << 20)                 # ~56 MiB on a 64 MiB v7x core
    return int(min(max(int(1.25 * need) + (4 << 20), 32 << 20), cap))


# ----------------------------------------------------------------------------
# Wrapper
# ----------------------------------------------------------------------------
def position_wise_ffn(x, params, *, tm=None, bf16_io=False,
                      single_buffer_weights=None):
    """x: (B, T, d_model). params: dict from init_params().

    bf16_io=True streams x/out as bf16 (halves the activation HBM traffic —
    main lever on v5e); the residual/LayerNorm math stays in f32."""
    B, T, d_model = x.shape
    d_ff = params["w2"].shape[0]
    N = B * T

    io_dtype = jnp.bfloat16 if bf16_io else x.dtype
    io_bytes = jnp.dtype(io_dtype).itemsize

    if single_buffer_weights is None:
        single_buffer_weights = _single_buffer_supported()
    weight_buffers = 1 if single_buffer_weights else 2

    # Lane-dense output: pad d_model up to a multiple of 128 with zeros
    # (padded W2 cols / gamma / beta are zero => exact; padded cols sliced off).
    d_model_p = _round_up(d_model, 128)
    pad_d = d_model_p - d_model

    if tm is None:
        tm = _default_row_tile(d_model_p, d_ff, weight_buffers, io_bytes)
    tm = _round_up(max(int(tm), 256), 256)        # MXU-M / 128-lane friendly
    tm = min(tm, _round_up(N, 256))
    N_pad = _round_up(N, tm)

    x2 = x.reshape(N, d_model).astype(io_dtype)
    if pad_d or N_pad != N:
        x2 = jnp.pad(x2, ((0, N_pad - N), (0, pad_d)))

    # Weights: stored bf16 in HBM (halves DMA + VMEM residency, feeds MXU).
    w1 = params["w1"].astype(jnp.bfloat16)                      # (d_model, 2*d_ff)
    w2 = params["w2"].astype(jnp.bfloat16)                      # (d_ff, d_model)
    if pad_d:
        w1 = jnp.pad(w1, ((0, pad_d), (0, 0)))
        w2 = jnp.pad(w2, ((0, 0), (0, pad_d)))

    # Packed LN/bias vectors: 12 (1, d) inputs -> two arrays.
    v2 = jnp.concatenate([params["b2"], params["g2"], params["be2"]],
                         axis=0).astype(jnp.float32)            # (3, d_model)
    if pad_d:
        v2 = jnp.pad(v2, ((0, 0), (0, pad_d)))

    fused = (d_ff % 128 == 0)

    if single_buffer_weights:
        def wspec(shape):
            return pl.BlockSpec(shape, lambda i: (0, 0),
                                pipeline_mode=pl.Buffered(1))
    else:
        def wspec(shape):
            return pl.BlockSpec(shape, lambda i: (0, 0))

    row_spec = pl.BlockSpec((tm, d_model_p), lambda i: (i, 0))
    vmem_limit = _vmem_limit_bytes(tm, d_model_p, d_ff, weight_buffers, io_bytes)

    if fused:
        v1 = jnp.concatenate([params["b1"], params["g1"], params["be1"]],
                             axis=0).astype(jnp.float32)        # (3, 2*d_ff)
        kernel = functools.partial(ffn_fused_kernel, d_ff=d_ff, d_model=d_model)
        in_specs = [
            row_spec,                                           # x rows
            wspec((d_model_p, 2 * d_ff)),                       # W1 (fused)
            wspec((3, 2 * d_ff)),                               # b1 / g1 / be1
            wspec((d_ff, d_model_p)),                           # W2
            wspec((3, d_model_p)),                              # b2 / g2 / be2
        ]
        operands = (x2, w1, v1, w2, v2)
    else:
        # Fallback: split fc1/norm1 params host-side so the kernel never
        # slices across a lane boundary.
        w1a, w1b = w1[:, :d_ff], w1[:, d_ff:]
        v1 = jnp.concatenate(
            [params["b1"][:, :d_ff], params["g1"][:, :d_ff], params["be1"][:, :d_ff],
             params["b1"][:, d_ff:], params["g1"][:, d_ff:], params["be1"][:, d_ff:]],
            axis=0).astype(jnp.float32)                          # (6, d_ff)
        kernel = functools.partial(ffn_split_kernel, d_ff=d_ff, d_model=d_model)
        in_specs = [
            row_spec,
            wspec((d_model_p, d_ff)),                           # W1 value half
            wspec((d_model_p, d_ff)),                           # W1 gate half
            wspec((6, d_ff)),                                   # packed norm1/bias halves
            wspec((d_ff, d_model_p)),                           # W2
            wspec((3, d_model_p)),                               # b2 / g2 / be2
        ]
        operands = (x2, w1a, w1b, v1, w2, v2)

    out = pl.pallas_call(
        kernel,
        out_shape=jax.ShapeDtypeStruct((N_pad, d_model_p), io_dtype),
        grid_spec=pltpu.PrefetchScalarGridSpec(
            num_scalar_prefetch=0,
            grid=(N_pad // tm,),
            in_specs=in_specs,
            out_specs=row_spec,
        ),
        compiler_params=pltpu.CompilerParams(
            dimension_semantics=("parallel",),
            vmem_limit_bytes=vmem_limit),
    )(*operands)

    if pad_d or N_pad != N:
        out = out[:N, :d_model]
    return out.reshape(B, T, d_model)


# ----------------------------------------------------------------------------
# Synthetic params + pure-JAX reference
# ----------------------------------------------------------------------------
def init_params(key, d_model, d_ff):
    """Torch-shaped params; Linear weights stored pre-transposed as (in, out).
    gamma/beta randomized so the affine LayerNorm terms are exercised."""
    ks = jax.random.split(key, 8)
    s1 = 1.0 / jnp.sqrt(d_model)
    s2 = 1.0 / jnp.sqrt(d_ff)
    return {
        "w1": jax.random.uniform(ks[0], (d_model, 2 * d_ff), jnp.float32, -s1, s1),
        "b1": jax.random.uniform(ks[1], (1, 2 * d_ff), jnp.float32, -s1, s1),
        "g1": jax.random.uniform(ks[2], (1, 2 * d_ff), jnp.float32, 0.5, 1.5),
        "be1": jax.random.uniform(ks[3], (1, 2 * d_ff), jnp.float32, -0.2, 0.2),
        "w2": jax.random.uniform(ks[4], (d_ff, d_model), jnp.float32, -s2, s2),
        "b2": jax.random.uniform(ks[5], (1, d_model), jnp.float32, -s2, s2),
        "g2": jax.random.uniform(ks[6], (1, d_model), jnp.float32, 0.5, 1.5),
        "be2": jax.random.uniform(ks[7], (1, d_model), jnp.float32, -0.2, 0.2),
    }


def _ln_ref(x, gamma, beta):
    mu = jnp.mean(x, axis=-1, keepdims=True)
    var = jnp.mean(jnp.square(x - mu), axis=-1, keepdims=True)
    return (x - mu) * jax.lax.rsqrt(var + EPS) * gamma + beta


def ffn_ref(x, p):
    """Pure-f32 JAX reference mirroring the torch forward."""
    h = x @ p["w1"] + p["b1"]
    h = _ln_ref(h, p["g1"], p["be1"])
    d_ff = p["w2"].shape[0]
    a, gate = h[..., :d_ff], h[..., d_ff:]
    y = jax.nn.sigmoid(gate) * a
    y = y @ p["w2"] + p["b2"]
    y = _ln_ref(y, p["g2"], p["be2"])
    return x + y


if __name__ == "__main__":
    # Small but lane-friendly demo: d_model and d_ff are multiples of 128 so
    # the fused-fc1 path, GLU split and output stores are all lane-dense.
    d_model, d_ff = 128, 128
    B, T = 4, 256                        # N = 1024 rows -> grid of 4 with tm=256

    key = jax.random.PRNGKey(0)
    kx, kp = jax.random.split(key)
    x = jax.random.normal(kx, (B, T, d_model), jnp.float32)
    params = init_params(kp, d_model, d_ff)

    ref = ffn_ref(x, params)
    out = jax.block_until_ready(position_wise_ffn(x, params, tm=256))

    assert out.shape == x.shape and out.dtype == x.dtype
    # bf16 MXU operands vs f32 reference -> loosened tolerance.
    max_err = float(jnp.max(jnp.abs(out - ref)))
    assert bool(jnp.allclose(out, ref, atol=4e-2, rtol=4e-2)), (
        f"Pallas PositionWiseFFN mismatch, max |err| = {max_err}")
    print("KERNEL_OK")
</pallas_src>

<mosaic_0001>
module attributes {stable_mosaic.version = 11 : i64} {
  func.func @_probe(%arg0: i32, %arg1: memref<8x128xf32, #tpu.memory_space<vmem>>, %arg2: memref<8x128xf32, #tpu.memory_space<vmem>>, %arg3: memref<8x128xf32, #tpu.memory_space<vmem>>) attributes {dimension_semantics = [#tpu.dimension_semantics<arbitrary>], iteration_bounds = array<i64: 2>, scalar_prefetch = 0 : i64, scratch_operands = 0 : i64, tpu.core_type = #tpu.core_type<tc>, window_params = [{transform_indices = @transform_0, window_bounds = array<i64: 8, 128>}, {pipeline_mode = #tpu.pipeline_mode<synchronous>, transform_indices = @transform_1, window_bounds = array<i64: 8, 128>}, {transform_indices = @transform_2, window_bounds = array<i64: 8, 128>}]} {
    %c0 = arith.constant 0 : index
    %c0_0 = arith.constant 0 : index
    %0 = vector.load %arg1[%c0, %c0_0] : memref<8x128xf32, #tpu.memory_space<vmem>>, vector<8x128xf32>
    %c0_1 = arith.constant 0 : index
    %c0_2 = arith.constant 0 : index
    %1 = vector.load %arg2[%c0_1, %c0_2] : memref<8x128xf32, #tpu.memory_space<vmem>>, vector<8x128xf32>
    %2 = arith.addf %0, %1 : vector<8x128xf32>
    %c0_3 = arith.constant 0 : index
    %c0_4 = arith.constant 0 : index
    %3 = vector.load %arg3[%c0_3, %c0_4] : memref<8x128xf32, #tpu.memory_space<vmem>>, vector<8x128xf32>
    tpu.vector_store %arg3[%c0_3, %c0_4], %2 {strides = array<i32>} : memref<8x128xf32, #tpu.memory_space<vmem>>, vector<8x128xf32>,
    return
  }
  func.func @transform_0(%arg0: i32) -> (i32, i32) {
    %c0_i32 = arith.constant 0 : i32
    %c0_i32_0 = arith.constant 0 : i32
    return %arg0, %c0_i32 : i32, i32
  }
  func.func @transform_1(%arg0: i32) -> (i32, i32) {
    %c0_i32 = arith.constant 0 : i32
    %c0_i32_0 = arith.constant 0 : i32
    %c0_i32_1 = arith.constant 0 : i32
    return %c0_i32, %c0_i32_0 : i32, i32
  }
  func.func @transform_2(%arg0: i32) -> (i32, i32) {
    %c0_i32 = arith.constant 0 : i32
    %c0_i32_0 = arith.constant 0 : i32
    return %arg0, %c0_i32 : i32, i32
  }
}

module attributes {stable_mosaic.version = 11 : i64} {
  func.func @ffn_fused_kernel(%arg0: i32, %arg1: memref<256x128xf32, #tpu.memory_space<vmem>>, %arg2: memref<128x256xbf16, #tpu.memory_space<vmem>>, %arg3: memref<3x256xf32, #tpu.memory_space<vmem>>, %arg4: memref<128x128xbf16, #tpu.memory_space<vmem>>, %arg5: memref<3x128xf32, #tpu.memory_space<vmem>>, %arg6: memref<256x128xf32, #tpu.memory_space<vmem>>) attributes {dimension_semantics = [#tpu.dimension_semantics<parallel>], iteration_bounds = array<i64: 4>, scalar_prefetch = 0 : i64, scratch_operands = 0 : i64, tpu.core_type = #tpu.core_type<tc>, window_params = [{transform_indices = @transform_0, window_bounds = array<i64: 256, 128>}, {pipeline_mode = #tpu.pipeline_mode<synchronous>, transform_indices = @transform_1, window_bounds = array<i64: 128, 256>}, {pipeline_mode = #tpu.pipeline_mode<synchronous>, transform_indices = @transform_2, window_bounds = array<i64: 3, 256>}, {pipeline_mode = #tpu.pipeline_mode<synchronous>, transform_indices = @transform_3, window_bounds = array<i64: 128, 128>}, {pipeline_mode = #tpu.pipeline_mode<synchronous>, transform_indices = @transform_4, window_bounds = array<i64: 3, 128>}, {transform_indices = @transform_5, window_bounds = array<i64: 256, 128>}]} {
    %c0 = arith.constant 0 : index
    %c0_0 = arith.constant 0 : index
    %0 = vector.load %arg1[%c0, %c0_0] : memref<256x128xf32, #tpu.memory_space<vmem>>, vector<256x128xf32>
    %1 = arith.truncf %0 : vector<256x128xf32> to vector<256x128xbf16>
    %c0_1 = arith.constant 0 : index
    %c0_2 = arith.constant 0 : index
    %2 = vector.load %arg3[%c0_1, %c0_2] : memref<3x256xf32, #tpu.memory_space<vmem>>, vector<3x256xf32>
    %c0_3 = arith.constant 0 : index
    %c0_4 = arith.constant 0 : index
    %3 = vector.load %arg5[%c0_3, %c0_4] : memref<3x128xf32, #tpu.memory_space<vmem>>, vector<3x128xf32>
    %c0_5 = arith.constant 0 : index
    %c0_6 = arith.constant 0 : index
    %4 = vector.load %arg2[%c0_5, %c0_6] : memref<128x256xbf16, #tpu.memory_space<vmem>>, vector<128x256xbf16>
    %cst = arith.constant dense<0.000000e+00> : vector<256x256xf32>
    %5 = tpu.matmul %1, %4, %cst {dimension_numbers = #tpu.dot_dimension_numbers<[1], [0], [0], [1], [0, 0, 1, 1], [], []>} : vector<256x128xbf16>, vector<128x256xbf16>, vector<256x256xf32> -> vector<256x256xf32>
    %6 = vector.extract_strided_slice %2 {offsets = [0, 0], sizes = [1, 256], strides = [1, 1]} : vector<3x256xf32> to vector<1x256xf32>
    %7 = vector.broadcast %6 : vector<1x256xf32> to vector<256x256xf32>
    %8 = arith.addf %5, %7 : vector<256x256xf32>
    %cst_7 = arith.constant dense<0.000000e+00> : vector<256xf32>
    %9 = vector.multi_reduction <add>, %8, %cst_7 [1] : vector<256x256xf32> to vector<256xf32>
    %10 = vector.shape_cast %9 : vector<256xf32> to vector<256x1xf32>
    %cst_8 = arith.constant 2.560000e+02 : f32
    %11 = vector.broadcast %cst_8 : f32 to vector<256x1xf32>
    %12 = arith.divf %10, %11 : vector<256x1xf32>
    %13 = vector.broadcast %12 : vector<256x1xf32> to vector<256x256xf32>
    %14 = arith.subf %8, %13 : vector<256x256xf32>
    %15 = arith.mulf %14, %14 : vector<256x256xf32>
    %cst_9 = arith.constant dense<0.000000e+00> : vector<256xf32>
    %16 = vector.multi_reduction <add>, %15, %cst_9 [1] : vector<256x256xf32> to vector<256xf32>
    %17 = vector.shape_cast %16 : vector<256xf32> to vector<256x1xf32>
    %cst_10 = arith.constant 2.560000e+02 : f32
    %18 = vector.broadcast %cst_10 : f32 to vector<256x1xf32>
    %19 = arith.divf %17, %18 : vector<256x1xf32>
    %cst_11 = arith.constant 9.99999974E-6 : f32
    %20 = vector.broadcast %cst_11 : f32 to vector<256x1xf32>
    %21 = arith.addf %19, %20 : vector<256x1xf32>
    %22 = math.rsqrt %21 : vector<256x1xf32>
    %23 = vector.broadcast %22 : vector<256x1xf32> to vector<256x256xf32>
    %24 = arith.mulf %14, %23 : vector<256x256xf32>
    %25 = vector.extract_strided_slice %2 {offsets = [1, 0], sizes = [1, 256], strides = [1, 1]} : vector<3x256xf32> to vector<1x256xf32>
    %26 = vector.broadcast %25 : vector<1x256xf32> to vector<256x256xf32>
    %27 = arith.mulf %24, %26 : vector<256x256xf32>
    %28 = vector.extract_strided_slice %2 {offsets = [2, 0], sizes = [1, 256], strides = [1, 1]} : vector<3x256xf32> to vector<1x256xf32>
    %29 = vector.broadcast %28 : vector<1x256xf32> to vector<256x256xf32>
    %30 = arith.addf %27, %29 : vector<256x256xf32>
    %31 = vector.extract_strided_slice %30 {offsets = [0, 0], sizes = [256, 128], strides = [1, 1]} : vector<256x256xf32> to vector<256x128xf32>
    %32 = vector.extract_strided_slice %30 {offsets = [0, 128], sizes = [256, 128], strides = [1, 1]} : vector<256x256xf32> to vector<256x128xf32>
    %33 = arith.negf %32 : vector<256x128xf32>
    %34 = math.exp %33 : vector<256x128xf32>
    %cst_12 = arith.constant 1.000000e+00 : f32
    %35 = vector.broadcast %cst_12 : f32 to vector<256x128xf32>
    %36 = arith.addf %35, %34 : vector<256x128xf32>
    %37 = arith.divf %35, %36 : vector<256x128xf32>
    %38 = arith.mulf %37, %31 : vector<256x128xf32>
    %39 = arith.truncf %38 : vector<256x128xf32> to vector<256x128xbf16>
    %c0_13 = arith.constant 0 : index
    %c0_14 = arith.constant 0 : index
    %40 = vector.load %arg4[%c0_13, %c0_14] : memref<128x128xbf16, #tpu.memory_space<vmem>>, vector<128x128xbf16>
    %cst_15 = arith.constant dense<0.000000e+00> : vector<256x128xf32>
    %41 = tpu.matmul %39, %40, %cst_15 {dimension_numbers = #tpu.dot_dimension_numbers<[1], [0], [0], [1], [0, 0, 1, 1], [], []>} : vector<256x128xbf16>, vector<128x128xbf16>, vector<256x128xf32> -> vector<256x128xf32>
    %42 = vector.extract_strided_slice %3 {offsets = [0, 0], sizes = [1, 128], strides = [1, 1]} : vector<3x128xf32> to vector<1x128xf32>
    %43 = vector.broadcast %42 : vector<1x128xf32> to vector<256x128xf32>
    %44 = arith.addf %41, %43 : vector<256x128xf32>
    %cst_16 = arith.constant dense<0.000000e+00> : vector<256xf32>
    %45 = vector.multi_reduction <add>, %44, %cst_16 [1] : vector<256x128xf32> to vector<256xf32>
    %46 = vector.shape_cast %45 : vector<256xf32> to vector<256x1xf32>
    %cst_17 = arith.constant 7.812500e-03 : f32
    %47 = vector.broadcast %cst_17 : f32 to vector<256x1xf32>
    %48 = arith.mulf %46, %47 : vector<256x1xf32>
    %49 = arith.mulf %44, %44 : vector<256x128xf32>
    %cst_18 = arith.constant dense<0.000000e+00> : vector<256xf32>
    %50 = vector.multi_reduction <add>, %49, %cst_18 [1] : vector<256x128xf32> to vector<256xf32>
    %51 = vector.shape_cast %50 : vector<256xf32> to vector<256x1xf32>
    %cst_19 = arith.constant 7.812500e-03 : f32
    %52 = vector.broadcast %cst_19 : f32 to vector<256x1xf32>
    %53 = arith.mulf %51, %52 : vector<256x1xf32>
    %54 = arith.mulf %48, %48 : vector<256x1xf32>
    %55 = arith.subf %53, %54 : vector<256x1xf32>
    %cst_20 = arith.constant 0.000000e+00 : f32
    %56 = vector.broadcast %cst_20 : f32 to vector<256x1xf32>
    %57 = arith.maximumf %55, %56 : vector<256x1xf32>
    %58 = vector.broadcast %48 : vector<256x1xf32> to vector<256x128xf32>
    %59 = arith.subf %44, %58 : vector<256x128xf32>
    %cst_21 = arith.constant 9.99999974E-6 : f32
    %60 = vector.broadcast %cst_21 : f32 to vector<256x1xf32>
    %61 = arith.addf %57, %60 : vector<256x1xf32>
    %62 = math.rsqrt %61 : vector<256x1xf32>
    %63 = vector.broadcast %62 : vector<256x1xf32> to vector<256x128xf32>
    %64 = arith.mulf %59, %63 : vector<256x128xf32>
    %65 = vector.extract_strided_slice %3 {offsets = [1, 0], sizes = [1, 128], strides = [1, 1]} : vector<3x128xf32> to vector<1x128xf32>
    %66 = vector.broadcast %65 : vector<1x128xf32> to vector<256x128xf32>
    %67 = arith.mulf %64, %66 : vector<256x128xf32>
    %68 = vector.extract_strided_slice %3 {offsets = [2, 0], sizes = [1, 128], strides = [1, 1]} : vector<3x128xf32> to vector<1x128xf32>
    %69 = vector.broadcast %68 : vector<1x128xf32> to vector<256x128xf32>
    %70 = arith.addf %67, %69 : vector<256x128xf32>
    %71 = arith.addf %0, %70 : vector<256x128xf32>
    %c0_22 = arith.constant 0 : index
    %c0_23 = arith.constant 0 : index
    %72 = vector.load %arg6[%c0_22, %c0_23] : memref<256x128xf32, #tpu.memory_space<vmem>>, vector<256x128xf32>
    tpu.vector_store %arg6[%c0_22, %c0_23], %71 {strides = array<i32>} : memref<256x128xf32, #tpu.memory_space<vmem>>, vector<256x128xf32>,
    return
  }
  func.func @transform_0(%arg0: i32) -> (i32, i32) {
    %c0_i32 = arith.constant 0 : i32
    %c0_i32_0 = arith.constant 0 : i32
    return %arg0, %c0_i32 : i32, i32
  }
  func.func @transform_1(%arg0: i32) -> (i32, i32) {
    %c0_i32 = arith.constant 0 : i32
    %c0_i32_0 = arith.constant 0 : i32
    %c0_i32_1 = arith.constant 0 : i32
    return %c0_i32, %c0_i32_0 : i32, i32
  }
  func.func @transform_2(%arg0: i32) -> (i32, i32) {
    %c0_i32 = arith.constant 0 : i32
    %c0_i32_0 = arith.constant 0 : i32
    %c0_i32_1 = arith.constant 0 : i32
    return %c0_i32, %c0_i32_0 : i32, i32
  }
  func.func @transform_3(%arg0: i32) -> (i32, i32) {
    %c0_i32 = arith.constant 0 : i32
    %c0_i32_0 = arith.constant 0 : i32
    %c0_i32_1 = arith.constant 0 : i32
    return %c0_i32, %c0_i32_0 : i32, i32
  }
  func.func @transform_4(%arg0: i32) -> (i32, i32) {
    %c0_i32 = arith.constant 0 : i32
    %c0_i32_0 = arith.constant 0 : i32
    %c0_i32_1 = arith.constant 0 : i32
    return %c0_i32, %c0_i32_0 : i32, i32
  }
  func.func @transform_5(%arg0: i32) -> (i32, i32) {
    %c0_i32 = arith.constant 0 : i32
    %c0_i32_0 = arith.constant 0 : i32
    return %arg0, %c0_i32 : i32, i32
  }
}

</mosaic_0001>

<llo_original>
// kernel: tpu_custom_call.1
$region0: #{tpu_custom_call.1}
  #allocation0 [shape = 'u32[]', space=smem, size = 0x4, offset = 0x4, fixed_abs, tag = 'smem constant byte address 0x4 - core index']
  #allocation1 [shape = 'u32[144,128]{1,0:T(1,128)}', space=vmem, size = 0x12000, scoped, tag = 'internal scratch']
  %s0 = inlined_call_operand.hbm [shape: f32[16,128], index: 0, kind: input, shape index: {}]
  %s1 = inlined_call_operand.hbm [shape: f32[8,128], index: 1, kind: input, shape index: {}]
  %s2 = inlined_call_operand.hbm [shape: f32[16,128], index: 2, kind: output, shape index: {}]
  %s3 = sld [smem:[#allocation0]]
  $region49: #{tpu_custom_call.1} parent=0
    _
  %s5 = ssub.s32 1, %s3
  %s6 = scalar_select 0, %s5, %s3
  $region1: #{tpu_custom_call.1} parent=0
    #allocation2 [shape = 'u8[8192]{0}', space=vmem, size = 0x2000, scoped, tag = 'input window, operand 0']
    #allocation3 [shape = 's32[2]{0}', space=sflag, size = 0x8, scoped, tag = 'scoped memory for tpu_custom_call.1']
    #allocation4 [shape = 's32[2]{0}', space=sflag, size = 0x8, scoped, tag = 'scoped memory for tpu_custom_call.1']
    #allocation5 [shape = 'u8[4096]{0}', space=vmem, size = 0x1000, scoped, tag = 'input window, operand 1, single buffered']
    #allocation6 [shape = 's32[1]{0}', space=sflag, size = 0x4, scoped, tag = 'scoped memory for tpu_custom_call.1']
    #allocation7 [shape = 'u8[8192]{0}', space=vmem, size = 0x2000, scoped, tag = 'output window, operand 0']
    %7 = vsyncpa [#allocation3], 0
    %s8 = scalar_lea.sflag [#allocation3], 1
    %9 = vsyncpa %s8, 0
    %10 = vsyncpa [#allocation6], 0
    %11 = vsyncpa [#allocation4], 0
    %s12 = scalar_lea.sflag [#allocation4], 1
    %13 = vsyncpa %s12, 0
    loop: start=0, step=1, limit=4
    $region2: #{tpu_custom_call.1} parent=1 // loop_pre_header
      _
    $region3: #{tpu_custom_call.1} parent=1 // loop_header
      %s15 = sphi 0, %s19
      %p16 = scmp.ge.s32.totalorder %s15, 4
      %s25 = sphi 0, %s27
      %s28 = sphi 0, %s25
      %s29 = sphi 0, %s28
      %s45 = sphi 0, %s29
      %s49 = sphi 0, %s49
      %s51 = sphi 0, %s49
      %s52 = sphi 0, %s51
      %s66 = sphi 0, %s52
      %s72 = sphi 0, %s74
      %s75 = sphi 0, %s72
      %s76 = sphi 0, %s75
      %s92 = sphi 0, %s76
    $region4: #{tpu_custom_call.1} parent=1 // loop_header_branch
      %18 = sbr.rel (%p16) target = $region8
    $region5: #{tpu_custom_call.1} parent=1 // loop_body
      %s20 = ssub.s32 %s15, 1
      %s21 = ssub.s32 %s15, 2
      %s22 = sadd.s32 %s15, 1
      %s23 = ssub.s32 %s15, %s22
      %p24 = scmp.eq.s32.totalorder %s23, 0
      %s26 = sadd.s32 %s25, 1
      %s27 = scalar_select %p24, %s25, %s26
      %p30 = pneg %p24
      %p31 = scmp.eq.s32.totalorder %s15, 1
      %p32 = por %p30, %p31
      %p33 = scmp.ne.s32.totalorder %s25, %s28
      %p34 = scmp.eq.s32.totalorder %s15, 0
      %p35 = por %p33, %p34
      %p36 = scmp.ne.s32.totalorder %s25, %s28
      %p37 = scmp.eq.s32.totalorder %s20, 1
      %p38 = por %p36, %p37
      %p39 = scmp.ne.s32.totalorder %s28, %s29
      %p40 = scmp.eq.s32.totalorder %s20, 0
      %p41 = por %p39, %p40
      %p42 = scmp.ne.s32.totalorder %s28, %s29
      %p43 = scmp.eq.s32.totalorder %s21, 1
      %p44 = por %p42, %p43
      %p46 = scmp.ne.s32.totalorder %s29, %s45
      %p47 = scmp.eq.s32.totalorder %s21, 0
      %p48 = por %p46, %p47
      %s50 = sadd.s32 %s49, 1
      %p53 = scmp.eq.s32.totalorder %s15, 1
      %p54 = scmp.ne.s32.totalorder %s49, %s51
      %p55 = scmp.eq.s32.totalorder %s15, 0
      %p56 = por %p54, %p55
      %p57 = scmp.ne.s32.totalorder %s49, %s51
      %p58 = scmp.eq.s32.totalorder %s20, 1
      %p59 = por %p57, %p58
      %p60 = scmp.ne.s32.totalorder %s51, %s52
      %p61 = scmp.eq.s32.totalorder %s20, 0
      %p62 = por %p60, %p61
      %p63 = scmp.ne.s32.totalorder %s51, %s52
      %p64 = scmp.eq.s32.totalorder %s21, 1
      %p65 = por %p63, %p64
      %p67 = scmp.ne.s32.totalorder %s52, %s66
      %p68 = scmp.eq.s32.totalorder %s21, 0
      %p69 = por %p67, %p68
      %s70 = ssub.s32 %s15, %s22
      %p71 = scmp.eq.s32.totalorder %s70, 0
      %s73 = sadd.s32 %s72, 1
      %s74 = scalar_select %p71, %s72, %s73
      %p77 = pneg %p71
      %p78 = scmp.eq.s32.totalorder %s15, 1
      %p79 = por %p77, %p78
      %p80 = scmp.ne.s32.totalorder %s72, %s75
      %p81 = scmp.eq.s32.totalorder %s15, 0
      %p82 = por %p80, %p81
      %p83 = scmp.ne.s32.totalorder %s72, %s75
      %p84 = scmp.eq.s32.totalorder %s20, 1
      %p85 = por %p83, %p84
      %p86 = scmp.ne.s32.totalorder %s75, %s76
      %p87 = scmp.eq.s32.totalorder %s20, 0
      %p88 = por %p86, %p87
      %p89 = scmp.ne.s32.totalorder %s75, %s76
      %p90 = scmp.eq.s32.totalorder %s21, 1
      %p91 = por %p89, %p90
      %p93 = scmp.ne.s32.totalorder %s76, %s92
      %p94 = scmp.eq.s32.totalorder %s21, 0
      %p95 = por %p93, %p94
      %p96 = scmp.le.s32.totalorder 1, %s15
      %p97 = scmp.lt.s32.totalorder %s15, 3
      %p98 = pnand %p96, %p97
      %p99 = pneg %p98
      // Predicated region
      $region9: #{tpu_custom_call.1} parent=5 // pred_check
        _
      $region10: #{tpu_custom_call.1} parent=5 // pred_check_branch
        %101 = sbr.rel (%p98) target = $region12
      $region11: #{tpu_custom_call.1} parent=5 // pred_region
        %s102 = ssub.s32 %s15, 1
        // Predicated region
        $region13: #{tpu_custom_call.1} parent=11 // pred_check
          %p103 = pneg %p62
        $region14: #{tpu_custom_call.1} parent=11 // pred_check_branch
          %105 = sbr.rel (%p103) target = $region16
        $region15: #{tpu_custom_call.1} parent=11 // pred_region
          %s107 = ssub.s32 128, 128
          %108 = vsyncadd [#allocation6], %s107
          %s110 = sshll.u32 [#allocation5], 4
          %s111 = int_to_ptr.vmem [resolvable:$true] %s110
          %113 = dma.hbm_to_vmem [thread:$0]  %s1, 128, %s111, [#allocation6]
        $region16: #{tpu_custom_call.1} parent=11 // pred_fallthru
          _
      $region12: #{tpu_custom_call.1} parent=5 // pred_fallthru
        _
      %p114 = scmp.lt.s32.totalorder %s15, 2
      // Predicated region
      $region17: #{tpu_custom_call.1} parent=5 // pred_check
        %p115 = pneg %p114
      $region18: #{tpu_custom_call.1} parent=5 // pred_check_branch
        %117 = sbr.rel (%p115) target = $region20
      $region19: #{tpu_custom_call.1} parent=5 // pred_region
        // Predicated region
        $region21: #{tpu_custom_call.1} parent=19 // pred_check
          %p118 = pneg %p35
        $region22: #{tpu_custom_call.1} parent=19 // pred_check_branch
          %120 = sbr.rel (%p118) target = $region24
        $region23: #{tpu_custom_call.1} parent=19 // pred_region
          %s121 = sand.u32 %s25, 1
          %s122 = scalar_lea.sflag [#allocation3], %s121
          %s123 = sand.u32 %s25, 1
          %s124 = smul.addr %s123, 8
          %s125 = scalar_lea.vmem [#allocation2], %s124
          %s127 = ssub.s32 128, 128
          %128 = vsyncadd %s122, %s127
          %s129 = smul.addr %s15, 128
          %s130 = scalar_lea.hbm %s0, %s129
          %s132 = sshll.u32 %s125, 4
          %s133 = int_to_ptr.vmem [resolvable:$true] %s132
          %135 = dma.hbm_to_vmem [thread:$0]  %s130, 128, %s133, %s122
        $region24: #{tpu_custom_call.1} parent=19 // pred_fallthru
          _
      $region20: #{tpu_custom_call.1} parent=5 // pred_fallthru
        _
      %p136 = scmp.le.s32.totalorder 1, %s15
      %p137 = scmp.lt.s32.totalorder %s15, 3
      %p138 = pnand %p136, %p137
      %p139 = pneg %p138
      // Predicated region
      $region25: #{tpu_custom_call.1} parent=5 // pred_check
        _
      $region26: #{tpu_custom_call.1} parent=5 // pred_check_branch
        %141 = sbr.rel (%p138) target = $region28
      $region27: #{tpu_custom_call.1} parent=5 // pred_region
        %s142 = ssub.s32 %s15, 1
        %s143 = sand.u32 %s28, 1
        %s144 = scalar_lea.sflag [#allocation3], %s143
        %s145 = sand.u32 %s28, 1
        %s146 = smul.addr %s145, 8
        %s147 = scalar_lea.vmem [#allocation2], %s146
        // Predicated region
        $region29: #{tpu_custom_call.1} parent=27 // pred_check
          %p148 = pneg %p41
        $region30: #{tpu_custom_call.1} parent=27 // pred_check_branch
          %150 = sbr.rel (%p148) target = $region32
        $region31: #{tpu_custom_call.1} parent=27 // pred_region
          %151 = dma.done %s144, 128
        $region32: #{tpu_custom_call.1} parent=27 // pred_fallthru
          _
        // Predicated region
        $region33: #{tpu_custom_call.1} parent=27 // pred_check
          %p152 = pneg %p62
        $region34: #{tpu_custom_call.1} parent=27 // pred_check_branch
          %154 = sbr.rel (%p152) target = $region36
        $region35: #{tpu_custom_call.1} parent=27 // pred_region
          %155 = dma.done [#allocation6], 128
        $region36: #{tpu_custom_call.1} parent=27 // pred_fallthru
          _
        %s156 = sand.u32 %s28, 1
        %s157 = scalar_lea.sflag [#allocation3], %s156
        %s158 = sand.u32 %s28, 1
        %s159 = smul.addr %s158, 8
        %s160 = scalar_lea.vmem [#allocation2], %s159
        %p161 = pneg %p41
        %p162 = pneg %p38
        %p163 = pneg %p62
        %p164 = pneg %p59
        %p165 = pneg %p88
        %p166 = pneg %p85
        %s167 = sand.u32 %s75, 1
        %s168 = scalar_lea.sflag [#allocation4], %s167
        %s169 = sand.u32 %s75, 1
        %s170 = smul.addr %s169, 8
        %s171 = scalar_lea.vmem [#allocation7], %s170
        %v172 = vld [vmem:[%s147] sm:$0xff]
        %v173 = vld [vmem:[#allocation5] sm:$0xff]
        %v174 = vadd.f32 %v172, %v173
        %175 = vst [vmem:[%s171] sm:$0xff] %v174
        %s176 = sand.u32 %s75, 1
        %s177 = scalar_lea.sflag [#allocation4], %s176
        %s178 = sand.u32 %s75, 1
        %s179 = smul.addr %s178, 8
        %s180 = scalar_lea.vmem [#allocation7], %s179
        // Predicated region
        $region37: #{tpu_custom_call.1} parent=27 // pred_check
          %p181 = pneg %p85
        $region38: #{tpu_custom_call.1} parent=27 // pred_check_branch
          %183 = sbr.rel (%p181) target = $region40
        $region39: #{tpu_custom_call.1} parent=27 // pred_region
          %s185 = ssub.s32 128, 128
          %186 = vsyncadd %s177, %s185
          %s187 = smul.addr %s20, 128
          %s188 = scalar_lea.hbm %s2, %s187
          %s190 = sshll.u32 %s180, 4
          %s191 = int_to_ptr.vmem [resolvable:$true] %s190
          %193 = dma.vmem_to_hbm [thread:$0]  %s191, 128, %s188, %s177
        $region40: #{tpu_custom_call.1} parent=27 // pred_fallthru
          _
      $region28: #{tpu_custom_call.1} parent=5 // pred_fallthru
        _
      %p194 = scmp.le.s32.totalorder 2, %s15
      // Predicated region
      $region41: #{tpu_custom_call.1} parent=5 // pred_check
        %p195 = pneg %p194
      $region42: #{tpu_custom_call.1} parent=5 // pred_check_branch
        %197 = sbr.rel (%p195) target = $region44
      $region43: #{tpu_custom_call.1} parent=5 // pred_region
        %s198 = ssub.s32 %s15, 2
        // Predicated region
        $region45: #{tpu_custom_call.1} parent=43 // pred_check
          %p199 = pneg %p91
        $region46: #{tpu_custom_call.1} parent=43 // pred_check_branch
          %201 = sbr.rel (%p199) target = $region48
        $region47: #{tpu_custom_call.1} parent=43 // pred_region
          %s202 = sand.u32 %s76, 1
          %s203 = scalar_lea.sflag [#allocation4], %s202
          %s204 = sand.u32 %s76, 1
          %s205 = smul.addr %s204, 8
          %s206 = scalar_lea.vmem [#allocation7], %s205
          %207 = dma.done %s203, 128
        $region48: #{tpu_custom_call.1} parent=43 // pred_fallthru
          _
      $region44: #{tpu_custom_call.1} parent=5 // pred_fallthru
        _
    $region6: #{tpu_custom_call.1} parent=1 // loop_footer
      %s19 = sadd.s32 1, %s15
    $region7: #{tpu_custom_call.1} parent=1 // loop_footer_branch
      %14 = sbr.rel target = $region3
    $region8: #{tpu_custom_call.1} parent=1 // loop_exit
      _
    %208 = vsyncpa [#allocation3], 1
    %s209 = scalar_lea.sflag [#allocation3], 1
    %210 = vsyncpa %s209, 1
    %211 = vsyncpa [#allocation6], 1
    %212 = vsyncpa [#allocation4], 1
    %s213 = scalar_lea.sflag [#allocation4], 1
    %214 = vsyncpa %s213, 1

// kernel: tpu_custom_call.1
$region0: #{tpu_custom_call.1}
  #allocation0 [shape = 'u32[]', space=smem, size = 0x4, offset = 0x4, fixed_abs, tag = 'smem constant byte address 0x4 - core index']
  #allocation1 [shape = 'u32[144,128]{1,0:T(1,128)}', space=vmem, size = 0x12000, scoped, tag = 'internal scratch']
  %s0 = inlined_call_operand.hbm [shape: f32[1024,128], index: 0, kind: input, shape index: {}]
  %s1 = inlined_call_operand.hbm [shape: bf16[128,256], index: 1, kind: input, shape index: {}]
  %s2 = inlined_call_operand.hbm [shape: f32[3,256], index: 2, kind: input, shape index: {}]
  %s3 = inlined_call_operand.hbm [shape: bf16[128,128], index: 3, kind: input, shape index: {}]
  %s4 = inlined_call_operand.vmem [shape: f32[3,128], index: 4, kind: input, shape index: {}]
  %s5 = inlined_call_operand.hbm [shape: f32[1024,128], index: 5, kind: output, shape index: {}]
  %s6 = sld [smem:[#allocation0]]
  $region69: #{tpu_custom_call.1} parent=0
    _
  %s8 = ssub.s32 1, %s6
  %s9 = scalar_select 0, %s8, %s6
  $region1: #{tpu_custom_call.1} parent=0
    #allocation2 [shape = 'u8[262144]{0}', space=vmem, size = 0x40000, scoped, tag = 'input window, operand 0']
    #allocation3 [shape = 's32[2]{0}', space=sflag, size = 0x8, scoped, tag = 'scoped memory for tpu_custom_call.1']
    #allocation4 [shape = 's32[2]{0}', space=sflag, size = 0x8, scoped, tag = 'scoped memory for tpu_custom_call.1']
    #allocation5 [shape = 'u8[65536]{0}', space=vmem, size = 0x10000, scoped, tag = 'input window, operand 1, single buffered']
    #allocation6 [shape = 's32[1]{0}', space=sflag, size = 0x4, scoped, tag = 'scoped memory for tpu_custom_call.1']
    #allocation7 [shape = 'u8[4096]{0}', space=vmem, size = 0x1000, scoped, tag = 'input window, operand 2, single buffered']
    #allocation8 [shape = 'u8[32768]{0}', space=vmem, size = 0x8000, scoped, tag = 'input window, operand 3, single buffered']
    #allocation9 [shape = 's32[1]{0}', space=sflag, size = 0x4, scoped, tag = 'scoped memory for tpu_custom_call.1']
    #allocation10 [shape = 'u8[262144]{0}', space=vmem, size = 0x40000, scoped, tag = 'output window, operand 0']
    %10 = vsyncpa [#allocation3], 0
    %s11 = scalar_lea.sflag [#allocation3], 1
    %12 = vsyncpa %s11, 0
    %13 = vsyncpa [#allocation6], 0
    %14 = vsyncpa [#allocation9], 0
    %15 = vsyncpa [#allocation4], 0
    %s16 = scalar_lea.sflag [#allocation4], 1
    %17 = vsyncpa %s16, 0
    loop: start=0, step=1, limit=6
    $region2: #{tpu_custom_call.1} parent=1 // loop_pre_header
      _
    $region3: #{tpu_custom_call.1} parent=1 // loop_header
      %s19 = sphi 0, %s23
      %p20 = scmp.ge.s32.totalorder %s19, 6
      %s29 = sphi 0, %s31
      %s32 = sphi 0, %s29
      %s33 = sphi 0, %s32
      %s49 = sphi 0, %s33
      %s53 = sphi 0, %s53
      %s55 = sphi 0, %s53
      %s56 = sphi 0, %s55
      %s70 = sphi 0, %s56
      %s74 = sphi 0, %s74
      %s76 = sphi 0, %s74
      %s77 = sphi 0, %s76
      %s91 = sphi 0, %s77
      %s95 = sphi 0, %s95
      %s97 = sphi 0, %s95
      %s98 = sphi 0, %s97
      %s112 = sphi 0, %s98
      %s116 = sphi 0, %s116
      %s118 = sphi 0, %s116
      %s119 = sphi 0, %s118
      %s133 = sphi 0, %s119
      %s139 = sphi 0, %s141
      %s142 = sphi 0, %s139
      %s143 = sphi 0, %s142
      %s159 = sphi 0, %s143
    $region4: #{tpu_custom_call.1} parent=1 // loop_header_branch
      %22 = sbr.rel (%p20) target = $region8
    $region5: #{tpu_custom_call.1} parent=1 // loop_body
      %s24 = ssub.s32 %s19, 1
      %s25 = ssub.s32 %s19, 2
      %s26 = sadd.s32 %s19, 1
      %s27 = ssub.s32 %s19, %s26
      %p28 = scmp.eq.s32.totalorder %s27, 0
      %s30 = sadd.s32 %s29, 1
      %s31 = scalar_select %p28, %s29, %s30
      %p34 = pneg %p28
      %p35 = scmp.eq.s32.totalorder %s19, 3
      %p36 = por %p34, %p35
      %p37 = scmp.ne.s32.totalorder %s29, %s32
      %p38 = scmp.eq.s32.totalorder %s19, 0
      %p39 = por %p37, %p38
      %p40 = scmp.ne.s32.totalorder %s29, %s32
      %p41 = scmp.eq.s32.totalorder %s24, 3
      %p42 = por %p40, %p41
      %p43 = scmp.ne.s32.totalorder %s32, %s33
      %p44 = scmp.eq.s32.totalorder %s24, 0
      %p45 = por %p43, %p44
      %p46 = scmp.ne.s32.totalorder %s32, %s33
      %p47 = scmp.eq.s32.totalorder %s25, 3
      %p48 = por %p46, %p47
      %p50 = scmp.ne.s32.totalorder %s33, %s49
      %p51 = scmp.eq.s32.totalorder %s25, 0
      %p52 = por %p50, %p51
      %s54 = sadd.s32 %s53, 1
      %p57 = scmp.eq.s32.totalorder %s19, 3
      %p58 = scmp.ne.s32.totalorder %s53, %s55
      %p59 = scmp.eq.s32.totalorder %s19, 0
      %p60 = por %p58, %p59
      %p61 = scmp.ne.s32.totalorder %s53, %s55
      %p62 = scmp.eq.s32.totalorder %s24, 3
      %p63 = por %p61, %p62
      %p64 = scmp.ne.s32.totalorder %s55, %s56
      %p65 = scmp.eq.s32.totalorder %s24, 0
      %p66 = por %p64, %p65
      %p67 = scmp.ne.s32.totalorder %s55, %s56
      %p68 = scmp.eq.s32.totalorder %s25, 3
      %p69 = por %p67, %p68
      %p71 = scmp.ne.s32.totalorder %s56, %s70
      %p72 = scmp.eq.s32.totalorder %s25, 0
      %p73 = por %p71, %p72
      %s75 = sadd.s32 %s74, 1
      %p78 = scmp.eq.s32.totalorder %s19, 3
      %p79 = scmp.ne.s32.totalorder %s74, %s76
      %p80 = scmp.eq.s32.totalorder %s19, 0
      %p81 = por %p79, %p80
      %p82 = scmp.ne.s32.totalorder %s74, %s76
      %p83 = scmp.eq.s32.totalorder %s24, 3
      %p84 = por %p82, %p83
      %p85 = scmp.ne.s32.totalorder %s76, %s77
      %p86 = scmp.eq.s32.totalorder %s24, 0
      %p87 = por %p85, %p86
      %p88 = scmp.ne.s32.totalorder %s76, %s77
      %p89 = scmp.eq.s32.totalorder %s25, 3
      %p90 = por %p88, %p89
      %p92 = scmp.ne.s32.totalorder %s77, %s91
      %p93 = scmp.eq.s32.totalorder %s25, 0
      %p94 = por %p92, %p93
      %s96 = sadd.s32 %s95, 1
      %p99 = scmp.eq.s32.totalorder %s19, 3
      %p100 = scmp.ne.s32.totalorder %s95, %s97
      %p101 = scmp.eq.s32.totalorder %s19, 0
      %p102 = por %p100, %p101
      %p103 = scmp.ne.s32.totalorder %s95, %s97
      %p104 = scmp.eq.s32.totalorder %s24, 3
      %p105 = por %p103, %p104
      %p106 = scmp.ne.s32.totalorder %s97, %s98
      %p107 = scmp.eq.s32.totalorder %s24, 0
      %p108 = por %p106, %p107
      %p109 = scmp.ne.s32.totalorder %s97, %s98
      %p110 = scmp.eq.s32.totalorder %s25, 3
      %p111 = por %p109, %p110
      %p113 = scmp.ne.s32.totalorder %s98, %s112
      %p114 = scmp.eq.s32.totalorder %s25, 0
      %p115 = por %p113, %p114
      %s117 = sadd.s32 %s116, 1
      %p120 = scmp.eq.s32.totalorder %s19, 3
      %p121 = scmp.ne.s32.totalorder %s116, %s118
      %p122 = scmp.eq.s32.totalorder %s19, 0
      %p123 = por %p121, %p122
      %p124 = scmp.ne.s32.totalorder %s116, %s118
      %p125 = scmp.eq.s32.totalorder %s24, 3
      %p126 = por %p124, %p125
      %p127 = scmp.ne.s32.totalorder %s118, %s119
      %p128 = scmp.eq.s32.totalorder %s24, 0
      %p129 = por %p127, %p128
      %p130 = scmp.ne.s32.totalorder %s118, %s119
      %p131 = scmp.eq.s32.totalorder %s25, 3
      %p132 = por %p130, %p131
      %p134 = scmp.ne.s32.totalorder %s119, %s133
      %p135 = scmp.eq.s32.totalorder %s25, 0
      %p136 = por %p134, %p135
      %s137 = ssub.s32 %s19, %s26
      %p138 = scmp.eq.s32.totalorder %s137, 0
      %s140 = sadd.s32 %s139, 1
      %s141 = scalar_select %p138, %s139, %s140
      %p144 = pneg %p138
      %p145 = scmp.eq.s32.totalorder %s19, 3
      %p146 = por %p144, %p145
      %p147 = scmp.ne.s32.totalorder %s139, %s142
      %p148 = scmp.eq.s32.totalorder %s19, 0
      %p149 = por %p147, %p148
      %p150 = scmp.ne.s32.totalorder %s139, %s142
      %p151 = scmp.eq.s32.totalorder %s24, 3
      %p152 = por %p150, %p151
      %p153 = scmp.ne.s32.totalorder %s142, %s143
      %p154 = scmp.eq.s32.totalorder %s24, 0
      %p155 = por %p153, %p154
      %p156 = scmp.ne.s32.totalorder %s142, %s143
      %p157 = scmp.eq.s32.totalorder %s25, 3
      %p158 = por %p156, %p157
      %p160 = scmp.ne.s32.totalorder %s143, %s159
      %p161 = scmp.eq.s32.totalorder %s25, 0
      %p162 = por %p160, %p161
      %p163 = scmp.le.s32.totalorder 1, %s19
      %p164 = scmp.lt.s32.totalorder %s19, 5
      %p165 = pnand %p163, %p164
      %p166 = pneg %p165
      // Predicated region
      $region9: #{tpu_custom_call.1} parent=5 // pred_check
        _
      $region10: #{tpu_custom_call.1} parent=5 // pred_check_branch
        %168 = sbr.rel (%p165) target = $region12
      $region11: #{tpu_custom_call.1} parent=5 // pred_region
        %s169 = ssub.s32 %s19, 1
        // Predicated region
        $region13: #{tpu_custom_call.1} parent=11 // pred_check
          %p170 = pneg %p66
        $region14: #{tpu_custom_call.1} parent=11 // pred_check_branch
          %172 = sbr.rel (%p170) target = $region16
        $region15: #{tpu_custom_call.1} parent=11 // pred_region
          %s174 = ssub.s32 2048, 2048
          %175 = vsyncadd [#allocation6], %s174
          %s176 = sshll.u32 [#allocation5], 4
          %s177 = int_to_ptr.vmem [resolvable:$true] %s176
          %182 = dma.hbm_to_vmem [thread:$0]  %s1, 2048, %s177, [#allocation6], 128, 128, 8
        $region16: #{tpu_custom_call.1} parent=11 // pred_fallthru
          _
        // Predicated region
        $region17: #{tpu_custom_call.1} parent=11 // pred_check
          %p183 = pneg %p87
        $region18: #{tpu_custom_call.1} parent=11 // pred_check_branch
          %185 = sbr.rel (%p183) target = $region20
        $region19: #{tpu_custom_call.1} parent=11 // pred_region
          %s187 = ssub.s32 128, 128
          %188 = vsyncadd [#allocation6], %s187
          %s190 = sshll.u32 [#allocation7], 4
          %s191 = int_to_ptr.vmem [resolvable:$true] %s190
          %193 = dma.hbm_to_vmem [thread:$0]  %s2, 128, %s191, [#allocation6]
        $region20: #{tpu_custom_call.1} parent=11 // pred_fallthru
          _
        // Predicated region
        $region21: #{tpu_custom_call.1} parent=11 // pred_check
          %p194 = pneg %p108
        $region22: #{tpu_custom_call.1} parent=11 // pred_check_branch
          %196 = sbr.rel (%p194) target = $region24
        $region23: #{tpu_custom_call.1} parent=11 // pred_region
          %s198 = ssub.s32 1024, 1024
          %199 = vsyncadd [#allocation9], %s198
          %s200 = sshll.u32 [#allocation8], 4
          %s201 = int_to_ptr.vmem [resolvable:$true] %s200
          %206 = dma.hbm_to_vmem [thread:$0]  %s3, 1024, %s201, [#allocation9], 64, 64, 4
        $region24: #{tpu_custom_call.1} parent=11 // pred_fallthru
          _
        // Predicated region
        $region25: #{tpu_custom_call.1} parent=11 // pred_check
          %p207 = pneg %p129
        $region26: #{tpu_custom_call.1} parent=11 // pred_check_branch
          %209 = sbr.rel (%p207) target = $region28
        $region27: #{tpu_custom_call.1} parent=11 // pred_region
          _
        $region28: #{tpu_custom_call.1} parent=11 // pred_fallthru
          _
      $region12: #{tpu_custom_call.1} parent=5 // pred_fallthru
        _
      %p210 = scmp.lt.s32.totalorder %s19, 4
      // Predicated region
      $region29: #{tpu_custom_call.1} parent=5 // pred_check
        %p211 = pneg %p210
      $region30: #{tpu_custom_call.1} parent=5 // pred_check_branch
        %213 = sbr.rel (%p211) target = $region32
      $region31: #{tpu_custom_call.1} parent=5 // pred_region
        // Predicated region
        $region33: #{tpu_custom_call.1} parent=31 // pred_check
          %p214 = pneg %p39
        $region34: #{tpu_custom_call.1} parent=31 // pred_check_branch
          %216 = sbr.rel (%p214) target = $region36
        $region35: #{tpu_custom_call.1} parent=31 // pred_region
          %s217 = sand.u32 %s29, 1
          %s218 = scalar_lea.sflag [#allocation3], %s217
          %s219 = sand.u32 %s29, 1
          %s220 = smul.addr %s219, 256
          %s221 = scalar_lea.vmem [#allocation2], %s220
          %s222 = smul.u32 32, %s19
          %s224 = ssub.s32 4096, 4096
          %225 = vsyncadd %s218, %s224
          %s226 = smul.addr %s222, 128
          %s227 = scalar_lea.hbm %s0, %s226
          %s228 = sshll.u32 %s221, 4
          %s229 = int_to_ptr.vmem [resolvable:$true] %s228
          %234 = dma.hbm_to_vmem [thread:$0]  %s227, 4096, %s229, %s218, 128, 128, 8
        $region36: #{tpu_custom_call.1} parent=31 // pred_fallthru
          _
      $region32: #{tpu_custom_call.1} parent=5 // pred_fallthru
        _
      %p235 = scmp.le.s32.totalorder 1, %s19
      %p236 = scmp.lt.s32.totalorder %s19, 5
      %p237 = pnand %p235, %p236
      %p238 = pneg %p237
      // Predicated region
      $region37: #{tpu_custom_call.1} parent=5 // pred_check
        _
      $region38: #{tpu_custom_call.1} parent=5 // pred_check_branch
        %240 = sbr.rel (%p237) target = $region40
      $region39: #{tpu_custom_call.1} parent=5 // pred_region
        %s241 = ssub.s32 %s19, 1
        %s242 = sand.u32 %s32, 1
        %s243 = scalar_lea.sflag [#allocation3], %s242
        %s244 = sand.u32 %s32, 1
        %s245 = smul.addr %s244, 256
        %s246 = scalar_lea.vmem [#allocation2], %s245
        // Predicated region
        $region41: #{tpu_custom_call.1} parent=39 // pred_check
          %p247 = pneg %p45
        $region42: #{tpu_custom_call.1} parent=39 // pred_check_branch
          %249 = sbr.rel (%p247) target = $region44
        $region43: #{tpu_custom_call.1} parent=39 // pred_region
          %250 = dma.done %s243, 4096
        $region44: #{tpu_custom_call.1} parent=39 // pred_fallthru
          _
        // Predicated region
        $region45: #{tpu_custom_call.1} parent=39 // pred_check
          %p251 = pneg %p66
        $region46: #{tpu_custom_call.1} parent=39 // pred_check_branch
          %253 = sbr.rel (%p251) target = $region48
        $region47: #{tpu_custom_call.1} parent=39 // pred_region
          %254 = dma.done [#allocation6], 2048
        $region48: #{tpu_custom_call.1} parent=39 // pred_fallthru
          _
        // Predicated region
        $region49: #{tpu_custom_call.1} parent=39 // pred_check
          %p255 = pneg %p87
        $region50: #{tpu_custom_call.1} parent=39 // pred_check_branch
          %257 = sbr.rel (%p255) target = $region52
        $region51: #{tpu_custom_call.1} parent=39 // pred_region
          %258 = dma.done [#allocation6], 128
        $region52: #{tpu_custom_call.1} parent=39 // pred_fallthru
          _
        // Predicated region
        $region53: #{tpu_custom_call.1} parent=39 // pred_check
          %p259 = pneg %p108
        $region54: #{tpu_custom_call.1} parent=39 // pred_check_branch
          %261 = sbr.rel (%p259) target = $region56
        $region55: #{tpu_custom_call.1} parent=39 // pred_region
          %262 = dma.done [#allocation9], 1024
        $region56: #{tpu_custom_call.1} parent=39 // pred_fallthru
          _
        %s263 = sand.u32 %s32, 1
        %s264 = scalar_lea.sflag [#allocation3], %s263
        %s265 = sand.u32 %s32, 1
        %s266 = smul.addr %s265, 256
        %s267 = scalar_lea.vmem [#allocation2], %s266
        %p268 = pneg %p45
        %p269 = pneg %p42
        %p270 = pneg %p66
        %p271 = pneg %p63
        %p272 = pneg %p87
        %p273 = pneg %p84
        %p274 = pneg %p108
        %p275 = pneg %p105
        %p276 = pneg %p129
        %p277 = pneg %p126
        %p278 = pneg %p155
        %p279 = pneg %p152
        %s280 = sand.u32 %s142, 1
        %s281 = scalar_lea.sflag [#allocation4], %s280
        %s282 = sand.u32 %s142, 1
        %s283 = smul.addr %s282, 256
        %s284 = scalar_lea.vmem [#allocation10], %s283
        %s285 = smul.u32 32, %s24
        %s286 = smul.u32 32, %s24
        %v288 = vld [vmem:[%s246] sm:$0xff]
        %v289 = vld [vmem:[%s246 + $0x8] sm:$0xff]
        %v290 = vld [vmem:[%s246 + $0x10] sm:$0xff]
        %v291 = vld [vmem:[%s246 + $0x18] sm:$0xff]
        %v292 = vld [vmem:[%s246 + $0x20] sm:$0xff]
        %v293 = vld [vmem:[%s246 + $0x28] sm:$0xff]
        %v294 = vld [vmem:[%s246 + $0x30] sm:$0xff]
        %v295 = vld [vmem:[%s246 + $0x38] sm:$0xff]
        %v296 = vld [vmem:[%s246 + $0x40] sm:$0xff]
        %v297 = vld [vmem:[%s246 + $0x48] sm:$0xff]
        %v298 = vld [vmem:[%s246 + $0x50] sm:$0xff]
        %v299 = vld [vmem:[%s246 + $0x58] sm:$0xff]
        %v300 = vld [vmem:[%s246 + $0x60] sm:$0xff]
        %v301 = vld [vmem:[%s246 + $0x68] sm:$0xff]
        %v302 = vld [vmem:[%s246 + $0x70] sm:$0xff]
        %v303 = vld [vmem:[%s246 + $0x78] sm:$0xff]
        %v304 = vld [vmem:[%s246 + $0x80] sm:$0xff]
        %v305 = vld [vmem:[%s246 + $0x88] sm:$0xff]
        %v306 = vld [vmem:[%s246 + $0x90] sm:$0xff]
        %v307 = vld [vmem:[%s246 + $0x98] sm:$0xff]
        %v308 = vld [vmem:[%s246 + $0xa0] sm:$0xff]
        %v309 = vld [vmem:[%s246 + $0xa8] sm:$0xff]
        %v310 = vld [vmem:[%s246 + $0xb0] sm:$0xff]
        %v311 = vld [vmem:[%s246 + $0xb8] sm:$0xff]
        %v312 = vld [vmem:[%s246 + $0xc0] sm:$0xff]
        %v313 = vld [vmem:[%s246 + $0xc8] sm:$0xff]
        %v314 = vld [vmem:[%s246 + $0xd0] sm:$0xff]
        %v315 = vld [vmem:[%s246 + $0xd8] sm:$0xff]
        %v316 = vld [vmem:[%s246 + $0xe0] sm:$0xff]
        %v317 = vld [vmem:[%s246 + $0xe8] sm:$0xff]
        %v318 = vld [vmem:[%s246 + $0xf0] sm:$0xff]
        %v319 = vld [vmem:[%s246 + $0xf8] sm:$0xff]
        %v320 = vpack.c.bf16 %v289, %v288
        %v321 = vpack.c.bf16 %v291, %v290
        %v322 = vpack.c.bf16 %v293, %v292
        %v323 = vpack.c.bf16 %v295, %v294
        %v324 = vpack.c.bf16 %v297, %v296
        %v325 = vpack.c.bf16 %v299, %v298
        %v326 = vpack.c.bf16 %v301, %v300
        %v327 = vpack.c.bf16 %v303, %v302
        %v328 = vpack.c.bf16 %v305, %v304
        %v329 = vpack.c.bf16 %v307, %v306
        %v330 = vpack.c.bf16 %v309, %v308
        %v331 = vpack.c.bf16 %v311, %v310
        %v332 = vpack.c.bf16 %v313, %v312
        %v333 = vpack.c.bf16 %v315, %v314
        %v334 = vpack.c.bf16 %v317, %v316
        %v335 = vpack.c.bf16 %v319, %v318
        %v336 = vld [vmem:[#allocation7] sm:$0x77]
        %v337 = vld [vmem:[%s4] sm:$0x7]
        %v338 = vld [vmem:[#allocation5] sm:$0xff]
        %v339 = vld [vmem:[#allocation5 + $0x8] sm:$0xff]
        %v340 = vld [vmem:[#allocation5 + $0x10] sm:$0xff]
        %v341 = vld [vmem:[#allocation5 + $0x18] sm:$0xff]
        %v342 = vld [vmem:[#allocation5 + $0x20] sm:$0xff]
        %v343 = vld [vmem:[#allocation5 + $0x28] sm:$0xff]
        %v344 = vld [vmem:[#allocation5 + $0x30] sm:$0xff]
        %v345 = vld [vmem:[#allocation5 + $0x38] sm:$0xff]
        %v346 = vld [vmem:[#allocation5 + $0x40] sm:$0xff]
        %v347 = vld [vmem:[#allocation5 + $0x48] sm:$0xff]
        %v348 = vld [vmem:[#allocation5 + $0x50] sm:$0xff]
        %v349 = vld [vmem:[#allocation5 + $0x58] sm:$0xff]
        %v350 = vld [vmem:[#allocation5 + $0x60] sm:$0xff]
        %v351 = vld [vmem:[#allocation5 + $0x68] sm:$0xff]
        %v352 = vld [vmem:[#allocation5 + $0x70] sm:$0xff]
        %v353 = vld [vmem:[#allocation5 + $0x78] sm:$0xff]
        %v355 = vlaneseq
        %v356 = vshrl.u32 %v355, 7
        %v357 = vsub.s32 0, %v356
        %v358 = vrot.slane %v336, %v357
        %v359 = vlaneseq
        %v360 = vshrl.u32 %v359, 7
        %v361 = vsub.s32 4, %v360
        %v362 = vrot.slane %v336, %v361
        %v365 = vlaneseq
        %v366 = vshrl.u32 %v365, 7
        %v367 = vsub.s32 0, %v366
        %v368 = vrot.slane %v358, %v367
        %v369 = vlaneseq
        %v370 = vshrl.u32 %v369, 7
        %v371 = vsub.s32 0, %v370
        %v372 = vrot.slane %v362, %v371
        %v389 = vunpack.c.l.b16 %v338
        %v390 = vunpack.c.h.b16 %v338
        %v391 = vunpack.c.l.b16 %v339
        %v392 = vunpack.c.h.b16 %v339
        %v393 = vunpack.c.l.b16 %v340
        %v394 = vunpack.c.h.b16 %v340
        %v395 = vunpack.c.l.b16 %v341
        %v396 = vunpack.c.h.b16 %v341
        %v397 = vunpack.c.l.b16 %v342
        %v398 = vunpack.c.h.b16 %v342
        %v399 = vunpack.c.l.b16 %v343
        %v400 = vunpack.c.h.b16 %v343
        %v401 = vunpack.c.l.b16 %v344
        %v402 = vunpack.c.h.b16 %v344
        %v403 = vunpack.c.l.b16 %v345
        %v404 = vunpack.c.h.b16 %v345
        %v405 = vunpack.c.l.b16 %v346
        %v406 = vunpack.c.h.b16 %v346
        %v407 = vunpack.c.l.b16 %v347
        %v408 = vunpack.c.h.b16 %v347
        %v409 = vunpack.c.l.b16 %v348
        %v410 = vunpack.c.h.b16 %v348
        %v411 = vunpack.c.l.b16 %v349
        %v412 = vunpack.c.h.b16 %v349
        %v413 = vunpack.c.l.b16 %v350
        %v414 = vunpack.c.h.b16 %v350
        %v415 = vunpack.c.l.b16 %v351
        %v416 = vunpack.c.h.b16 %v351
        %v417 = vunpack.c.l.b16 %v352
        %v418 = vunpack.c.h.b16 %v352
        %v419 = vunpack.c.l.b16 %v353
        %v420 = vunpack.c.h.b16 %v353
        %v421 = vpack.c.b16 %v391, %v389
        %v422 = vpack.c.b16 %v392, %v390
        %v423 = vpack.c.b16 %v395, %v393
        %v424 = vpack.c.b16 %v396, %v394
        %v425 = vpack.c.b16 %v399, %v397
        %v426 = vpack.c.b16 %v400, %v398
        %v427 = vpack.c.b16 %v403, %v401
        %v428 = vpack.c.b16 %v404, %v402
        %v429 = vpack.c.b16 %v407, %v405
        %v430 = vpack.c.b16 %v408, %v406
        %v431 = vpack.c.b16 %v411, %v409
        %v432 = vpack.c.b16 %v412, %v410
        %v433 = vpack.c.b16 %v415, %v413
        %v434 = vpack.c.b16 %v416, %v414
        %v435 = vpack.c.b16 %v419, %v417
        %v436 = vpack.c.b16 %v420, %v418
        %453 = vmatprep.subr.bf16.mxu0 %v422
        %454 = vmatpush1.bf16.msra.mxu0 %v421
        %455 = vmatprep.subr.bf16.mxu0 %v424
        %456 = vmatpush1.bf16.msra.mxu0 %v423
        %457 = vmatprep.subr.bf16.mxu0 %v426
        %458 = vmatpush1.bf16.msra.mxu0 %v425
        %459 = vmatprep.subr.bf16.mxu0 %v428
        %460 = vmatpush1.bf16.msra.mxu0 %v427
        %461 = vmatprep.subr.bf16.mxu0 %v430
        %462 = vmatpush1.bf16.msra.mxu0 %v429
        %463 = vmatprep.subr.bf16.mxu0 %v432
        %464 = vmatpush1.bf16.msra.mxu0 %v431
        %465 = vmatprep.subr.bf16.mxu0 %v434
        %466 = vmatpush1.bf16.msra.mxu0 %v433
        %467 = vmatprep.subr.bf16.mxu0 %v436
        %468 = vmatpush1.bf16.msra.mxu0 %v435
        %469 = vmatprep.subr.bf16.mxu0 0
        %470 = vmatpush1.bf16.msra.mxu0 0
        %471 = vmatprep.subr.bf16.mxu0 0
        %472 = vmatpush1.bf16.msra.mxu0 0
        %473 = vmatprep.subr.bf16.mxu0 0
        %474 = vmatpush1.bf16.msra.mxu0 0
        %475 = vmatprep.subr.bf16.mxu0 0
        %476 = vmatpush1.bf16.msra.mxu0 0
        %477 = vmatprep.subr.bf16.mxu0 0
        %478 = vmatpush1.bf16.msra.mxu0 0
        %479 = vmatprep.subr.bf16.mxu0 0
        %480 = vmatpush1.bf16.msra.mxu0 0
        %481 = vmatprep.subr.bf16.mxu0 0
        %482 = vmatpush1.bf16.msra.mxu0 0
        %483 = vmatprep.subr.bf16.mxu0 0
        %484 = vmatpush1.bf16.msra.mxu0 0
        %485 = vmatprep.mubr.bf16.mxu0 0
        %486 = vmatmul.mubr.bf16.gmra.mrb[0].mxu0 %v320
        %v487 = vpop.f32.mrb[0].mxu0
        %v488 = vadd.f32 %v368, %v487
        %v489 = vpop.f32.mrb[0].mxu0
        %v490 = vadd.f32 %v372, %v489
        %v491 = vpop.f32.mrb[0].mxu0
        %v492 = vadd.f32 %v368, %v491
        %v493 = vpop.f32.mrb[0].mxu0
        %v494 = vadd.f32 %v372, %v493
        %495 = vmatprep.mubr.bf16.mxu0 0
        %496 = vmatmul.mubr.bf16.gmra.mrb[0].mxu0 %v321
        %v497 = vpop.f32.mrb[0].mxu0
        %v498 = vadd.f32 %v368, %v497
        %v499 = vpop.f32.mrb[0].mxu0
        %v500 = vadd.f32 %v372, %v499
        %v501 = vpop.f32.mrb[0].mxu0
        %v502 = vadd.f32 %v368, %v501
        %v503 = vpop.f32.mrb[0].mxu0
        %v504 = vadd.f32 %v372, %v503
        %505 = vmatprep.mubr.bf16.mxu0 0
        %506 = vmatmul.mubr.bf16.gmra.mrb[0].mxu0 %v322
        %v507 = vpop.f32.mrb[0].mxu0
        %v508 = vadd.f32 %v368, %v507
        %v509 = vpop.f32.mrb[0].mxu0
        %v510 = vadd.f32 %v372, %v509
        %v511 = vpop.f32.mrb[0].mxu0
        %v512 = vadd.f32 %v368, %v511
        %v513 = vpop.f32.mrb[0].mxu0
        %v514 = vadd.f32 %v372, %v513
        %515 = vmatprep.mubr.bf16.mxu0 0
        %516 = vmatmul.mubr.bf16.gmra.mrb[0].mxu0 %v323
        %v517 = vpop.f32.mrb[0].mxu0
        %v518 = vadd.f32 %v368, %v517
        %v519 = vpop.f32.mrb[0].mxu0
        %v520 = vadd.f32 %v372, %v519
        %v521 = vpop.f32.mrb[0].mxu0
        %v522 = vadd.f32 %v368, %v521
        %v523 = vpop.f32.mrb[0].mxu0
        %v524 = vadd.f32 %v372, %v523
        %525 = vmatprep.mubr.bf16.mxu0 0
        %526 = vmatmul.mubr.bf16.gmra.mrb[0].mxu0 %v324
        %v527 = vpop.f32.mrb[0].mxu0
        %v528 = vadd.f32 %v368, %v527
        %v529 = vpop.f32.mrb[0].mxu0
        %v530 = vadd.f32 %v372, %v529
        %v531 = vpop.f32.mrb[0].mxu0
        %v532 = vadd.f32 %v368, %v531
        %v533 = vpop.f32.mrb[0].mxu0
        %v534 = vadd.f32 %v372, %v533
        %535 = vmatprep.mubr.bf16.mxu0 0
        %536 = vmatmul.mubr.bf16.gmra.mrb[0].mxu0 %v325
        %v537 = vpop.f32.mrb[0].mxu0
        %v538 = vadd.f32 %v368, %v537
        %v539 = vpop.f32.mrb[0].mxu0
        %v540 = vadd.f32 %v372, %v539
        %v541 = vpop.f32.mrb[0].mxu0
        %v542 = vadd.f32 %v368, %v541
        %v543 = vpop.f32.mrb[0].mxu0
        %v544 = vadd.f32 %v372, %v543
        %545 = vmatprep.mubr.bf16.mxu0 0
        %546 = vmatmul.mubr.bf16.gmra.mrb[0].mxu0 %v326
        %v547 = vpop.f32.mrb[0].mxu0
        %v548 = vadd.f32 %v368, %v547
        %v549 = vpop.f32.mrb[0].mxu0
        %v550 = vadd.f32 %v372, %v549
        %v551 = vpop.f32.mrb[0].mxu0
        %v552 = vadd.f32 %v368, %v551
        %v553 = vpop.f32.mrb[0].mxu0
        %v554 = vadd.f32 %v372, %v553
        %555 = vmatprep.mubr.bf16.mxu0 0
        %556 = vmatmul.mubr.bf16.gmra.mrb[0].mxu0 %v327
        %v557 = vpop.f32.mrb[0].mxu0
        %v558 = vadd.f32 %v368, %v557
        %v559 = vpop.f32.mrb[0].mxu0
        %v560 = vadd.f32 %v372, %v559
        %v561 = vpop.f32.mrb[0].mxu0
        %v562 = vadd.f32 %v368, %v561
        %v563 = vpop.f32.mrb[0].mxu0
        %v564 = vadd.f32 %v372, %v563
        %565 = vmatprep.mubr.bf16.mxu0 0
        %566 = vmatmul.mubr.bf16.gmra.mrb[0].mxu0 %v328
        %v567 = vpop.f32.mrb[0].mxu0
        %v568 = vadd.f32 %v368, %v567
        %v569 = vpop.f32.mrb[0].mxu0
        %v570 = vadd.f32 %v372, %v569
        %v571 = vpop.f32.mrb[0].mxu0
        %v572 = vadd.f32 %v368, %v571
        %v573 = vpop.f32.mrb[0].mxu0
        %v574 = vadd.f32 %v372, %v573
        %575 = vmatprep.mubr.bf16.mxu0 0
        %576 = vmatmul.mubr.bf16.gmra.mrb[0].mxu0 %v329
        %v577 = vpop.f32.mrb[0].mxu0
        %v578 = vadd.f32 %v368, %v577
        %v579 = vpop.f32.mrb[0].mxu0
        %v580 = vadd.f32 %v372, %v579
        %v581 = vpop.f32.mrb[0].mxu0
        %v582 = vadd.f32 %v368, %v581
        %v583 = vpop.f32.mrb[0].mxu0
        %v584 = vadd.f32 %v372, %v583
        %585 = vmatprep.mubr.bf16.mxu0 0
        %586 = vmatmul.mubr.bf16.gmra.mrb[0].mxu0 %v330
        %v587 = vpop.f32.mrb[0].mxu0
        %v588 = vadd.f32 %v368, %v587
        %v589 = vpop.f32.mrb[0].mxu0
        %v590 = vadd.f32 %v372, %v589
        %v591 = vpop.f32.mrb[0].mxu0
        %v592 = vadd.f32 %v368, %v591
        %v593 = vpop.f32.mrb[0].mxu0
        %v594 = vadd.f32 %v372, %v593
        %595 = vmatprep.mubr.bf16.mxu0 0
        %596 = vmatmul.mubr.bf16.gmra.mrb[0].mxu0 %v331
        %v597 = vpop.f32.mrb[0].mxu0
        %v598 = vadd.f32 %v368, %v597
        %v599 = vpop.f32.mrb[0].mxu0
        %v600 = vadd.f32 %v372, %v599
        %v601 = vpop.f32.mrb[0].mxu0
        %v602 = vadd.f32 %v368, %v601
        %v603 = vpop.f32.mrb[0].mxu0
        %v604 = vadd.f32 %v372, %v603
        %605 = vmatprep.mubr.bf16.mxu0 0
        %606 = vmatmul.mubr.bf16.gmra.mrb[0].mxu0 %v332
        %v607 = vpop.f32.mrb[0].mxu0
        %v608 = vadd.f32 %v368, %v607
        %v609 = vpop.f32.mrb[0].mxu0
        %v610 = vadd.f32 %v372, %v609
        %v611 = vpop.f32.mrb[0].mxu0
        %v612 = vadd.f32 %v368, %v611
        %v613 = vpop.f32.mrb[0].mxu0
        %v614 = vadd.f32 %v372, %v613
        %615 = vmatprep.mubr.bf16.mxu0 0
        %616 = vmatmul.mubr.bf16.gmra.mrb[0].mxu0 %v333
        %v617 = vpop.f32.mrb[0].mxu0
        %v618 = vadd.f32 %v368, %v617
        %v619 = vpop.f32.mrb[0].mxu0
        %v620 = vadd.f32 %v372, %v619
        %v621 = vpop.f32.mrb[0].mxu0
        %v622 = vadd.f32 %v368, %v621
        %v623 = vpop.f32.mrb[0].mxu0
        %v624 = vadd.f32 %v372, %v623
        %625 = vmatprep.mubr.bf16.mxu0 0
        %626 = vmatmul.mubr.bf16.gmra.mrb[0].mxu0 %v334
        %v627 = vpop.f32.mrb[0].mxu0
        %v628 = vadd.f32 %v368, %v627
        %v629 = vpop.f32.mrb[0].mxu0
        %v630 = vadd.f32 %v372, %v629
        %v631 = vpop.f32.mrb[0].mxu0
        %v632 = vadd.f32 %v368, %v631
        %v633 = vpop.f32.mrb[0].mxu0
        %v634 = vadd.f32 %v372, %v633
        %635 = vmatprep.mubr.bf16.mxu0 0
        %636 = vmatmul.mubr.bf16.gmra.mrb[0].mxu0 %v335
        %v637 = vpop.f32.mrb[0].mxu0
        %v638 = vadd.f32 %v368, %v637
        %v639 = vpop.f32.mrb[0].mxu0
        %v640 = vadd.f32 %v372, %v639
        %v641 = vpop.f32.mrb[0].mxu0
        %v642 = vadd.f32 %v368, %v641
        %v643 = vpop.f32.mrb[0].mxu0
        %v644 = vadd.f32 %v372, %v643
        %645 = vdwg.mxu0
        %v646 = vadd.f32 %v488, %v490
        %647 = vadd.xlane.f32.xlu0 %v646
        %v648 = vpop.xlane.xlu0 %647
        %v649 = vadd.f32 %v492, %v494
        %650 = vadd.xlane.f32.xlu0 %v649
        %v651 = vpop.xlane.xlu0 %650
        %v652 = vadd.f32 %v498, %v500
        %653 = vadd.xlane.f32.xlu0 %v652
        %v654 = vpop.xlane.xlu0 %653
        %v655 = vadd.f32 %v502, %v504
        %656 = vadd.xlane.f32.xlu0 %v655
        %v657 = vpop.xlane.xlu0 %656
        %v658 = vadd.f32 %v508, %v510
        %659 = vadd.xlane.f32.xlu0 %v658
        %v660 = vpop.xlane.xlu0 %659
        %v661 = vadd.f32 %v512, %v514
        %662 = vadd.xlane.f32.xlu0 %v661
        %v663 = vpop.xlane.xlu0 %662
        %v664 = vadd.f32 %v518, %v520
        %665 = vadd.xlane.f32.xlu0 %v664
        %v666 = vpop.xlane.xlu0 %665
        %v667 = vadd.f32 %v522, %v524
        %668 = vadd.xlane.f32.xlu0 %v667
        %v669 = vpop.xlane.xlu0 %668
        %v670 = vadd.f32 %v528, %v530
        %671 = vadd.xlane.f32.xlu0 %v670
        %v672 = vpop.xlane.xlu0 %671
        %v673 = vadd.f32 %v532, %v534
        %674 = vadd.xlane.f32.xlu0 %v673
        %v675 = vpop.xlane.xlu0 %674
        %v676 = vadd.f32 %v538, %v540
        %677 = vadd.xlane.f32.xlu0 %v676
        %v678 = vpop.xlane.xlu0 %677
        %v679 = vadd.f32 %v542, %v544
        %680 = vadd.xlane.f32.xlu0 %v679
        %v681 = vpop.xlane.xlu0 %680
        %v682 = vadd.f32 %v548, %v550
        %683 = vadd.xlane.f32.xlu0 %v682
        %v684 = vpop.xlane.xlu0 %683
        %v685 = vadd.f32 %v552, %v554
        %686 = vadd.xlane.f32.xlu0 %v685
        %v687 = vpop.xlane.xlu0 %686
        %v688 = vadd.f32 %v558, %v560
        %689 = vadd.xlane.f32.xlu0 %v688
        %v690 = vpop.xlane.xlu0 %689
        %v691 = vadd.f32 %v562, %v564
        %692 = vadd.xlane.f32.xlu0 %v691
        %v693 = vpop.xlane.xlu0 %692
        %v694 = vadd.f32 %v568, %v570
        %695 = vadd.xlane.f32.xlu0 %v694
        %v696 = vpop.xlane.xlu0 %695
        %v697 = vadd.f32 %v572, %v574
        %698 = vadd.xlane.f32.xlu0 %v697
        %v699 = vpop.xlane.xlu0 %698
        %v700 = vadd.f32 %v578, %v580
        %701 = vadd.xlane.f32.xlu0 %v700
        %v702 = vpop.xlane.xlu0 %701
        %v703 = vadd.f32 %v582, %v584
        %704 = vadd.xlane.f32.xlu0 %v703
        %v705 = vpop.xlane.xlu0 %704
        %v706 = vadd.f32 %v588, %v590
        %707 = vadd.xlane.f32.xlu0 %v706
        %v708 = vpop.xlane.xlu0 %707
        %v709 = vadd.f32 %v592, %v594
        %710 = vadd.xlane.f32.xlu0 %v709
        %v711 = vpop.xlane.xlu0 %710
        %v712 = vadd.f32 %v598, %v600
        %713 = vadd.xlane.f32.xlu0 %v712
        %v714 = vpop.xlane.xlu0 %713
        %v715 = vadd.f32 %v602, %v604
        %716 = vadd.xlane.f32.xlu0 %v715
        %v717 = vpop.xlane.xlu0 %716
        %v718 = vadd.f32 %v608, %v610
        %719 = vadd.xlane.f32.xlu0 %v718
        %v720 = vpop.xlane.xlu0 %719
        %v721 = vadd.f32 %v612, %v614
        %722 = vadd.xlane.f32.xlu0 %v721
        %v723 = vpop.xlane.xlu0 %722
        %v724 = vadd.f32 %v618, %v620
        %725 = vadd.xlane.f32.xlu0 %v724
        %v726 = vpop.xlane.xlu0 %725
        %v727 = vadd.f32 %v622, %v624
        %728 = vadd.xlane.f32.xlu0 %v727
        %v729 = vpop.xlane.xlu0 %728
        %v730 = vadd.f32 %v628, %v630
        %731 = vadd.xlane.f32.xlu0 %v730
        %v732 = vpop.xlane.xlu0 %731
        %v733 = vadd.f32 %v632, %v634
        %734 = vadd.xlane.f32.xlu0 %v733
        %v735 = vpop.xlane.xlu0 %734
        %v736 = vadd.f32 %v638, %v640
        %737 = vadd.xlane.f32.xlu0 %v736
        %v738 = vpop.xlane.xlu0 %737
        %v739 = vadd.f32 %v642, %v644
        %740 = vadd.xlane.f32.xlu0 %v739
        %v741 = vpop.xlane.xlu0 %740
        %v742 = vrcp.pop 256.0
        %v743 = vmul.f32 %v648, %v742
        %v744 = vmul.f32 %v651, %v742
        %v745 = vmul.f32 %v654, %v742
        %v746 = vmul.f32 %v657, %v742
        %v747 = vmul.f32 %v660, %v742
        %v748 = vmul.f32 %v663, %v742
        %v749 = vmul.f32 %v666, %v742
        %v750 = vmul.f32 %v669, %v742
        %v751 = vmul.f32 %v672, %v742
        %v752 = vmul.f32 %v675, %v742
        %v753 = vmul.f32 %v678, %v742
        %v754 = vmul.f32 %v681, %v742
        %v755 = vmul.f32 %v684, %v742
        %v756 = vmul.f32 %v687, %v742
        %v757 = vmul.f32 %v690, %v742
        %v758 = vmul.f32 %v693, %v742
        %v759 = vmul.f32 %v696, %v742
        %v760 = vmul.f32 %v699, %v742
        %v761 = vmul.f32 %v702, %v742
        %v762 = vmul.f32 %v705, %v742
        %v763 = vmul.f32 %v708, %v742
        %v764 = vmul.f32 %v711, %v742
        %v765 = vmul.f32 %v714, %v742
        %v766 = vmul.f32 %v717, %v742
        %v767 = vmul.f32 %v720, %v742
        %v768 = vmul.f32 %v723, %v742
        %v769 = vmul.f32 %v726, %v742
        %v770 = vmul.f32 %v729, %v742
        %v771 = vmul.f32 %v732, %v742
        %v772 = vmul.f32 %v735, %v742
        %v773 = vmul.f32 %v738, %v742
        %v774 = vmul.f32 %v741, %v742
        %v775 = vsub.f32 %v488, %v743
        %v776 = vsub.f32 %v490, %v743
        %v777 = vsub.f32 %v492, %v744
        %v778 = vsub.f32 %v494, %v744
        %v779 = vsub.f32 %v498, %v745
        %v780 = vsub.f32 %v500, %v745
        %v781 = vsub.f32 %v502, %v746
        %v782 = vsub.f32 %v504, %v746
        %v783 = vsub.f32 %v508, %v747
        %v784 = vsub.f32 %v510, %v747
        %v785 = vsub.f32 %v512, %v748
        %v786 = vsub.f32 %v514, %v748
        %v787 = vsub.f32 %v518, %v749
        %v788 = vsub.f32 %v520, %v749
        %v789 = vsub.f32 %v522, %v750
        %v790 = vsub.f32 %v524, %v750
        %v791 = vsub.f32 %v528, %v751
        %v792 = vsub.f32 %v530, %v751
        %v793 = vsub.f32 %v532, %v752
        %v794 = vsub.f32 %v534, %v752
        %v795 = vsub.f32 %v538, %v753
        %v796 = vsub.f32 %v540, %v753
        %v797 = vsub.f32 %v542, %v754
        %v798 = vsub.f32 %v544, %v754
        %v799 = vsub.f32 %v548, %v755
        %v800 = vsub.f32 %v550, %v755
        %v801 = vsub.f32 %v552, %v756
        %v802 = vsub.f32 %v554, %v756
        %v803 = vsub.f32 %v558, %v757
        %v804 = vsub.f32 %v560, %v757
        %v805 = vsub.f32 %v562, %v758
        %v806 = vsub.f32 %v564, %v758
        %v807 = vsub.f32 %v568, %v759
        %v808 = vsub.f32 %v570, %v759
        %v809 = vsub.f32 %v572, %v760
        %v810 = vsub.f32 %v574, %v760
        %v811 = vsub.f32 %v578, %v761
        %v812 = vsub.f32 %v580, %v761
        %v813 = vsub.f32 %v582, %v762
        %v814 = vsub.f32 %v584, %v762
        %v815 = vsub.f32 %v588, %v763
        %v816 = vsub.f32 %v590, %v763
        %v817 = vsub.f32 %v592, %v764
        %v818 = vsub.f32 %v594, %v764
        %v819 = vsub.f32 %v598, %v765
        %v820 = vsub.f32 %v600, %v765
        %v821 = vsub.f32 %v602, %v766
        %v822 = vsub.f32 %v604, %v766
        %v823 = vsub.f32 %v608, %v767
        %v824 = vsub.f32 %v610, %v767
        %v825 = vsub.f32 %v612, %v768
        %v826 = vsub.f32 %v614, %v768
        %v827 = vsub.f32 %v618, %v769
        %v828 = vsub.f32 %v620, %v769
        %v829 = vsub.f32 %v622, %v770
        %v830 = vsub.f32 %v624, %v770
        %v831 = vsub.f32 %v628, %v771
        %v832 = vsub.f32 %v630, %v771
        %v833 = vsub.f32 %v632, %v772
        %v834 = vsub.f32 %v634, %v772
        %v835 = vsub.f32 %v638, %v773
        %v836 = vsub.f32 %v640, %v773
        %v837 = vsub.f32 %v642, %v774
        %v838 = vsub.f32 %v644, %v774
        %v839 = vmul.f32 %v775, %v775
        %v840 = vmul.f32 %v776, %v776
        %v841 = vmul.f32 %v777, %v777
        %v842 = vmul.f32 %v778, %v778
        %v843 = vmul.f32 %v779, %v779
        %v844 = vmul.f32 %v780, %v780
        %v845 = vmul.f32 %v781, %v781
        %v846 = vmul.f32 %v782, %v782
        %v847 = vmul.f32 %v783, %v783
        %v848 = vmul.f32 %v784, %v784
        %v849 = vmul.f32 %v785, %v785
        %v850 = vmul.f32 %v786, %v786
        %v851 = vmul.f32 %v787, %v787
        %v852 = vmul.f32 %v788, %v788
        %v853 = vmul.f32 %v789, %v789
        %v854 = vmul.f32 %v790, %v790
        %v855 = vmul.f32 %v791, %v791
        %v856 = vmul.f32 %v792, %v792
        %v857 = vmul.f32 %v793, %v793
        %v858 = vmul.f32 %v794, %v794
        %v859 = vmul.f32 %v795, %v795
        %v860 = vmul.f32 %v796, %v796
        %v861 = vmul.f32 %v797, %v797
        %v862 = vmul.f32 %v798, %v798
        %v863 = vmul.f32 %v799, %v799
        %v864 = vmul.f32 %v800, %v800
        %v865 = vmul.f32 %v801, %v801
        %v866 = vmul.f32 %v802, %v802
        %v867 = vmul.f32 %v803, %v803
        %v868 = vmul.f32 %v804, %v804
        %v869 = vmul.f32 %v805, %v805
        %v870 = vmul.f32 %v806, %v806
        %v871 = vmul.f32 %v807, %v807
        %v872 = vmul.f32 %v808, %v808
        %v873 = vmul.f32 %v809, %v809
        %v874 = vmul.f32 %v810, %v810
        %v875 = vmul.f32 %v811, %v811
        %v876 = vmul.f32 %v812, %v812
        %v877 = vmul.f32 %v813, %v813
        %v878 = vmul.f32 %v814, %v814
        %v879 = vmul.f32 %v815, %v815
        %v880 = vmul.f32 %v816, %v816
        %v881 = vmul.f32 %v817, %v817
        %v882 = vmul.f32 %v818, %v818
        %v883 = vmul.f32 %v819, %v819
        %v884 = vmul.f32 %v820, %v820
        %v885 = vmul.f32 %v821, %v821
        %v886 = vmul.f32 %v822, %v822
        %v887 = vmul.f32 %v823, %v823
        %v888 = vmul.f32 %v824, %v824
        %v889 = vmul.f32 %v825, %v825
        %v890 = vmul.f32 %v826, %v826
        %v891 = vmul.f32 %v827, %v827
        %v892 = vmul.f32 %v828, %v828
        %v893 = vmul.f32 %v829, %v829
        %v894 = vmul.f32 %v830, %v830
        %v895 = vmul.f32 %v831, %v831
        %v896 = vmul.f32 %v832, %v832
        %v897 = vmul.f32 %v833, %v833
        %v898 = vmul.f32 %v834, %v834
        %v899 = vmul.f32 %v835, %v835
        %v900 = vmul.f32 %v836, %v836
        %v901 = vmul.f32 %v837, %v837
        %v902 = vmul.f32 %v838, %v838
        %v903 = vadd.f32 %v839, %v840
        %904 = vadd.xlane.f32.xlu0 %v903
        %v905 = vpop.xlane.xlu0 %904
        %v906 = vadd.f32 %v841, %v842
        %907 = vadd.xlane.f32.xlu0 %v906
        %v908 = vpop.xlane.xlu0 %907
        %v909 = vadd.f32 %v843, %v844
        %910 = vadd.xlane.f32.xlu0 %v909
        %v911 = vpop.xlane.xlu0 %910
        %v912 = vadd.f32 %v845, %v846
        %913 = vadd.xlane.f32.xlu0 %v912
        %v914 = vpop.xlane.xlu0 %913
        %v915 = vadd.f32 %v847, %v848
        %916 = vadd.xlane.f32.xlu0 %v915
        %v917 = vpop.xlane.xlu0 %916
        %v918 = vadd.f32 %v849, %v850
        %919 = vadd.xlane.f32.xlu0 %v918
        %v920 = vpop.xlane.xlu0 %919
        %v921 = vadd.f32 %v851, %v852
        %922 = vadd.xlane.f32.xlu0 %v921
        %v923 = vpop.xlane.xlu0 %922
        %v924 = vadd.f32 %v853, %v854
        %925 = vadd.xlane.f32.xlu0 %v924
        %v926 = vpop.xlane.xlu0 %925
        %v927 = vadd.f32 %v855, %v856
        %928 = vadd.xlane.f32.xlu0 %v927
        %v929 = vpop.xlane.xlu0 %928
        %v930 = vadd.f32 %v857, %v858
        %931 = vadd.xlane.f32.xlu0 %v930
        %v932 = vpop.xlane.xlu0 %931
        %v933 = vadd.f32 %v859, %v860
        %934 = vadd.xlane.f32.xlu0 %v933
        %v935 = vpop.xlane.xlu0 %934
        %v936 = vadd.f32 %v861, %v862
        %937 = vadd.xlane.f32.xlu0 %v936
        %v938 = vpop.xlane.xlu0 %937
        %v939 = vadd.f32 %v863, %v864
        %940 = vadd.xlane.f32.xlu0 %v939
        %v941 = vpop.xlane.xlu0 %940
        %v942 = vadd.f32 %v865, %v866
        %943 = vadd.xlane.f32.xlu0 %v942
        %v944 = vpop.xlane.xlu0 %943
        %v945 = vadd.f32 %v867, %v868
        %946 = vadd.xlane.f32.xlu0 %v945
        %v947 = vpop.xlane.xlu0 %946
        %v948 = vadd.f32 %v869, %v870
        %949 = vadd.xlane.f32.xlu0 %v948
        %v950 = vpop.xlane.xlu0 %949
        %v951 = vadd.f32 %v871, %v872
        %952 = vadd.xlane.f32.xlu0 %v951
        %v953 = vpop.xlane.xlu0 %952
        %v954 = vadd.f32 %v873, %v874
        %955 = vadd.xlane.f32.xlu0 %v954
        %v956 = vpop.xlane.xlu0 %955
        %v957 = vadd.f32 %v875, %v876
        %958 = vadd.xlane.f32.xlu0 %v957
        %v959 = vpop.xlane.xlu0 %958
        %v960 = vadd.f32 %v877, %v878
        %961 = vadd.xlane.f32.xlu0 %v960
        %v962 = vpop.xlane.xlu0 %961
        %v963 = vadd.f32 %v879, %v880
        %964 = vadd.xlane.f32.xlu0 %v963
        %v965 = vpop.xlane.xlu0 %964
        %v966 = vadd.f32 %v881, %v882
        %967 = vadd.xlane.f32.xlu0 %v966
        %v968 = vpop.xlane.xlu0 %967
        %v969 = vadd.f32 %v883, %v884
        %970 = vadd.xlane.f32.xlu0 %v969
        %v971 = vpop.xlane.xlu0 %970
        %v972 = vadd.f32 %v885, %v886
        %973 = vadd.xlane.f32.xlu0 %v972
        %v974 = vpop.xlane.xlu0 %973
        %v975 = vadd.f32 %v887, %v888
        %976 = vadd.xlane.f32.xlu0 %v975
        %v977 = vpop.xlane.xlu0 %976
        %v978 = vadd.f32 %v889, %v890
        %979 = vadd.xlane.f32.xlu0 %v978
        %v980 = vpop.xlane.xlu0 %979
        %v981 = vadd.f32 %v891, %v892
        %982 = vadd.xlane.f32.xlu0 %v981
        %v983 = vpop.xlane.xlu0 %982
        %v984 = vadd.f32 %v893, %v894
        %985 = vadd.xlane.f32.xlu0 %v984
        %v986 = vpop.xlane.xlu0 %985
        %v987 = vadd.f32 %v895, %v896
        %988 = vadd.xlane.f32.xlu0 %v987
        %v989 = vpop.xlane.xlu0 %988
        %v990 = vadd.f32 %v897, %v898
        %991 = vadd.xlane.f32.xlu0 %v990
        %v992 = vpop.xlane.xlu0 %991
        %v993 = vadd.f32 %v899, %v900
        %994 = vadd.xlane.f32.xlu0 %v993
        %v995 = vpop.xlane.xlu0 %994
        %v996 = vadd.f32 %v901, %v902
        %997 = vadd.xlane.f32.xlu0 %v996
        %v998 = vpop.xlane.xlu0 %997
        %v999 = vmul.f32 %v905, %v742
        %v1000 = vmul.f32 %v908, %v742
        %v1001 = vmul.f32 %v911, %v742
        %v1002 = vmul.f32 %v914, %v742
        %v1003 = vmul.f32 %v917, %v742
        %v1004 = vmul.f32 %v920, %v742
        %v1005 = vmul.f32 %v923, %v742
        %v1006 = vmul.f32 %v926, %v742
        %v1007 = vmul.f32 %v929, %v742
        %v1008 = vmul.f32 %v932, %v742
        %v1009 = vmul.f32 %v935, %v742
        %v1010 = vmul.f32 %v938, %v742
        %v1011 = vmul.f32 %v941, %v742
        %v1012 = vmul.f32 %v944, %v742
        %v1013 = vmul.f32 %v947, %v742
        %v1014 = vmul.f32 %v950, %v742
        %v1015 = vmul.f32 %v953, %v742
        %v1016 = vmul.f32 %v956, %v742
        %v1017 = vmul.f32 %v959, %v742
        %v1018 = vmul.f32 %v962, %v742
        %v1019 = vmul.f32 %v965, %v742
        %v1020 = vmul.f32 %v968, %v742
        %v1021 = vmul.f32 %v971, %v742
        %v1022 = vmul.f32 %v974, %v742
        %v1023 = vmul.f32 %v977, %v742
        %v1024 = vmul.f32 %v980, %v742
        %v1025 = vmul.f32 %v983, %v742
        %v1026 = vmul.f32 %v986, %v742
        %v1027 = vmul.f32 %v989, %v742
        %v1028 = vmul.f32 %v992, %v742
        %v1029 = vmul.f32 %v995, %v742
        %v1030 = vmul.f32 %v998, %v742
        %v1031 = vadd.f32 %v999, 1e-05
        %v1032 = vadd.f32 %v1000, 1e-05
        %v1033 = vadd.f32 %v1001, 1e-05
        %v1034 = vadd.f32 %v1002, 1e-05
        %v1035 = vadd.f32 %v1003, 1e-05
        %v1036 = vadd.f32 %v1004, 1e-05
        %v1037 = vadd.f32 %v1005, 1e-05
        %v1038 = vadd.f32 %v1006, 1e-05
        %v1039 = vadd.f32 %v1007, 1e-05
        %v1040 = vadd.f32 %v1008, 1e-05
        %v1041 = vadd.f32 %v1009, 1e-05
        %v1042 = vadd.f32 %v1010, 1e-05
        %v1043 = vadd.f32 %v1011, 1e-05
        %v1044 = vadd.f32 %v1012, 1e-05
        %v1045 = vadd.f32 %v1013, 1e-05
        %v1046 = vadd.f32 %v1014, 1e-05
        %v1047 = vadd.f32 %v1015, 1e-05
        %v1048 = vadd.f32 %v1016, 1e-05
        %v1049 = vadd.f32 %v1017, 1e-05
        %v1050 = vadd.f32 %v1018, 1e-05
        %v1051 = vadd.f32 %v1019, 1e-05
        %v1052 = vadd.f32 %v1020, 1e-05
        %v1053 = vadd.f32 %v1021, 1e-05
        %v1054 = vadd.f32 %v1022, 1e-05
        %v1055 = vadd.f32 %v1023, 1e-05
        %v1056 = vadd.f32 %v1024, 1e-05
        %v1057 = vadd.f32 %v1025, 1e-05
        %v1058 = vadd.f32 %v1026, 1e-05
        %v1059 = vadd.f32 %v1027, 1e-05
        %v1060 = vadd.f32 %v1028, 1e-05
        %v1061 = vadd.f32 %v1029, 1e-05
        %v1062 = vadd.f32 %v1030, 1e-05
        %v1063 = vrsqrt.pop %v1031
        %v1064 = vrsqrt.pop %v1032
        %v1065 = vrsqrt.pop %v1033
        %v1066 = vrsqrt.pop %v1034
        %v1067 = vrsqrt.pop %v1035
        %v1068 = vrsqrt.pop %v1036
        %v1069 = vrsqrt.pop %v1037
        %v1070 = vrsqrt.pop %v1038
        %v1071 = vrsqrt.pop %v1039
        %v1072 = vrsqrt.pop %v1040
        %v1073 = vrsqrt.pop %v1041
        %v1074 = vrsqrt.pop %v1042
        %v1075 = vrsqrt.pop %v1043
        %v1076 = vrsqrt.pop %v1044
        %v1077 = vrsqrt.pop %v1045
        %v1078 = vrsqrt.pop %v1046
        %v1079 = vrsqrt.pop %v1047
        %v1080 = vrsqrt.pop %v1048
        %v1081 = vrsqrt.pop %v1049
        %v1082 = vrsqrt.pop %v1050
        %v1083 = vrsqrt.pop %v1051
        %v1084 = vrsqrt.pop %v1052
        %v1085 = vrsqrt.pop %v1053
        %v1086 = vrsqrt.pop %v1054
        %v1087 = vrsqrt.pop %v1055
        %v1088 = vrsqrt.pop %v1056
        %v1089 = vrsqrt.pop %v1057
        %v1090 = vrsqrt.pop %v1058
        %v1091 = vrsqrt.pop %v1059
        %v1092 = vrsqrt.pop %v1060
        %v1093 = vrsqrt.pop %v1061
        %v1094 = vrsqrt.pop %v1062
        %v1095 = vmul.f32 %v775, %v1063
        %v1096 = vmul.f32 %v776, %v1063
        %v1097 = vmul.f32 %v777, %v1064
        %v1098 = vmul.f32 %v778, %v1064
        %v1099 = vmul.f32 %v779, %v1065
        %v1100 = vmul.f32 %v780, %v1065
        %v1101 = vmul.f32 %v781, %v1066
        %v1102 = vmul.f32 %v782, %v1066
        %v1103 = vmul.f32 %v783, %v1067
        %v1104 = vmul.f32 %v784, %v1067
        %v1105 = vmul.f32 %v785, %v1068
        %v1106 = vmul.f32 %v786, %v1068
        %v1107 = vmul.f32 %v787, %v1069
        %v1108 = vmul.f32 %v788, %v1069
        %v1109 = vmul.f32 %v789, %v1070
        %v1110 = vmul.f32 %v790, %v1070
        %v1111 = vmul.f32 %v791, %v1071
        %v1112 = vmul.f32 %v792, %v1071
        %v1113 = vmul.f32 %v793, %v1072
        %v1114 = vmul.f32 %v794, %v1072
        %v1115 = vmul.f32 %v795, %v1073
        %v1116 = vmul.f32 %v796, %v1073
        %v1117 = vmul.f32 %v797, %v1074
        %v1118 = vmul.f32 %v798, %v1074
        %v1119 = vmul.f32 %v799, %v1075
        %v1120 = vmul.f32 %v800, %v1075
        %v1121 = vmul.f32 %v801, %v1076
        %v1122 = vmul.f32 %v802, %v1076
        %v1123 = vmul.f32 %v803, %v1077
        %v1124 = vmul.f32 %v804, %v1077
        %v1125 = vmul.f32 %v805, %v1078
        %v1126 = vmul.f32 %v806, %v1078
        %v1127 = vmul.f32 %v807, %v1079
        %v1128 = vmul.f32 %v808, %v1079
        %v1129 = vmul.f32 %v809, %v1080
        %v1130 = vmul.f32 %v810, %v1080
        %v1131 = vmul.f32 %v811, %v1081
        %v1132 = vmul.f32 %v812, %v1081
        %v1133 = vmul.f32 %v813, %v1082
        %v1134 = vmul.f32 %v814, %v1082
        %v1135 = vmul.f32 %v815, %v1083
        %v1136 = vmul.f32 %v816, %v1083
        %v1137 = vmul.f32 %v817, %v1084
        %v1138 = vmul.f32 %v818, %v1084
        %v1139 = vmul.f32 %v819, %v1085
        %v1140 = vmul.f32 %v820, %v1085
        %v1141 = vmul.f32 %v821, %v1086
        %v1142 = vmul.f32 %v822, %v1086
        %v1143 = vmul.f32 %v823, %v1087
        %v1144 = vmul.f32 %v824, %v1087
        %v1145 = vmul.f32 %v825, %v1088
        %v1146 = vmul.f32 %v826, %v1088
        %v1147 = vmul.f32 %v827, %v1089
        %v1148 = vmul.f32 %v828, %v1089
        %v1149 = vmul.f32 %v829, %v1090
        %v1150 = vmul.f32 %v830, %v1090
        %v1151 = vmul.f32 %v831, %v1091
        %v1152 = vmul.f32 %v832, %v1091
        %v1153 = vmul.f32 %v833, %v1092
        %v1154 = vmul.f32 %v834, %v1092
        %v1155 = vmul.f32 %v835, %v1093
        %v1156 = vmul.f32 %v836, %v1093
        %v1157 = vmul.f32 %v837, %v1094
        %v1158 = vmul.f32 %v838, %v1094
        %v1159 = vlaneseq
        %v1160 = vshrl.u32 %v1159, 7
        %v1161 = vsub.s32 1, %v1160
        %v1162 = vrot.slane %v336, %v1161
        %v1163 = vlaneseq
        %v1164 = vshrl.u32 %v1163, 7
        %v1165 = vsub.s32 5, %v1164
        %v1166 = vrot.slane %v336, %v1165
        %v1169 = vlaneseq
        %v1170 = vshrl.u32 %v1169, 7
        %v1171 = vsub.s32 1, %v1170
        %v1172 = vrot.slane %v1162, %v1171
        %v1173 = vlaneseq
        %v1174 = vshrl.u32 %v1173, 7
        %v1175 = vsub.s32 1, %v1174
        %v1176 = vrot.slane %v1166, %v1175
        %v1177 = vmul.f32 %v1095, %v1172
        %v1178 = vmul.f32 %v1096, %v1176
        %v1179 = vmul.f32 %v1097, %v1172
        %v1180 = vmul.f32 %v1098, %v1176
        %v1181 = vmul.f32 %v1099, %v1172
        %v1182 = vmul.f32 %v1100, %v1176
        %v1183 = vmul.f32 %v1101, %v1172
        %v1184 = vmul.f32 %v1102, %v1176
        %v1185 = vmul.f32 %v1103, %v1172
        %v1186 = vmul.f32 %v1104, %v1176
        %v1187 = vmul.f32 %v1105, %v1172
        %v1188 = vmul.f32 %v1106, %v1176
        %v1189 = vmul.f32 %v1107, %v1172
        %v1190 = vmul.f32 %v1108, %v1176
        %v1191 = vmul.f32 %v1109, %v1172
        %v1192 = vmul.f32 %v1110, %v1176
        %v1193 = vmul.f32 %v1111, %v1172
        %v1194 = vmul.f32 %v1112, %v1176
        %v1195 = vmul.f32 %v1113, %v1172
        %v1196 = vmul.f32 %v1114, %v1176
        %v1197 = vmul.f32 %v1115, %v1172
        %v1198 = vmul.f32 %v1116, %v1176
        %v1199 = vmul.f32 %v1117, %v1172
        %v1200 = vmul.f32 %v1118, %v1176
        %v1201 = vmul.f32 %v1119, %v1172
        %v1202 = vmul.f32 %v1120, %v1176
        %v1203 = vmul.f32 %v1121, %v1172
        %v1204 = vmul.f32 %v1122, %v1176
        %v1205 = vmul.f32 %v1123, %v1172
        %v1206 = vmul.f32 %v1124, %v1176
        %v1207 = vmul.f32 %v1125, %v1172
        %v1208 = vmul.f32 %v1126, %v1176
        %v1209 = vmul.f32 %v1127, %v1172
        %v1210 = vmul.f32 %v1128, %v1176
        %v1211 = vmul.f32 %v1129, %v1172
        %v1212 = vmul.f32 %v1130, %v1176
        %v1213 = vmul.f32 %v1131, %v1172
        %v1214 = vmul.f32 %v1132, %v1176
        %v1215 = vmul.f32 %v1133, %v1172
        %v1216 = vmul.f32 %v1134, %v1176
        %v1217 = vmul.f32 %v1135, %v1172
        %v1218 = vmul.f32 %v1136, %v1176
        %v1219 = vmul.f32 %v1137, %v1172
        %v1220 = vmul.f32 %v1138, %v1176
        %v1221 = vmul.f32 %v1139, %v1172
        %v1222 = vmul.f32 %v1140, %v1176
        %v1223 = vmul.f32 %v1141, %v1172
        %v1224 = vmul.f32 %v1142, %v1176
        %v1225 = vmul.f32 %v1143, %v1172
        %v1226 = vmul.f32 %v1144, %v1176
        %v1227 = vmul.f32 %v1145, %v1172
        %v1228 = vmul.f32 %v1146, %v1176
        %v1229 = vmul.f32 %v1147, %v1172
        %v1230 = vmul.f32 %v1148, %v1176
        %v1231 = vmul.f32 %v1149, %v1172
        %v1232 = vmul.f32 %v1150, %v1176
        %v1233 = vmul.f32 %v1151, %v1172
        %v1234 = vmul.f32 %v1152, %v1176
        %v1235 = vmul.f32 %v1153, %v1172
        %v1236 = vmul.f32 %v1154, %v1176
        %v1237 = vmul.f32 %v1155, %v1172
        %v1238 = vmul.f32 %v1156, %v1176
        %v1239 = vmul.f32 %v1157, %v1172
        %v1240 = vmul.f32 %v1158, %v1176
        %v1241 = vlaneseq
        %v1242 = vshrl.u32 %v1241, 7
        %v1243 = vsub.s32 2, %v1242
        %v1244 = vrot.slane %v336, %v1243
        %v1245 = vlaneseq
        %v1246 = vshrl.u32 %v1245, 7
        %v1247 = vsub.s32 6, %v1246
        %v1248 = vrot.slane %v336, %v1247
        %v1251 = vlaneseq
        %v1252 = vshrl.u32 %v1251, 7
        %v1253 = vsub.s32 2, %v1252
        %v1254 = vrot.slane %v1244, %v1253
        %v1255 = vlaneseq
        %v1256 = vshrl.u32 %v1255, 7
        %v1257 = vsub.s32 2, %v1256
        %v1258 = vrot.slane %v1248, %v1257
        %v1259 = vadd.f32 %v1177, %v1254
        %v1260 = vadd.f32 %v1178, %v1258
        %v1261 = vadd.f32 %v1179, %v1254
        %v1262 = vadd.f32 %v1180, %v1258
        %v1263 = vadd.f32 %v1181, %v1254
        %v1264 = vadd.f32 %v1182, %v1258
        %v1265 = vadd.f32 %v1183, %v1254
        %v1266 = vadd.f32 %v1184, %v1258
        %v1267 = vadd.f32 %v1185, %v1254
        %v1268 = vadd.f32 %v1186, %v1258
        %v1269 = vadd.f32 %v1187, %v1254
        %v1270 = vadd.f32 %v1188, %v1258
        %v1271 = vadd.f32 %v1189, %v1254
        %v1272 = vadd.f32 %v1190, %v1258
        %v1273 = vadd.f32 %v1191, %v1254
        %v1274 = vadd.f32 %v1192, %v1258
        %v1275 = vadd.f32 %v1193, %v1254
        %v1276 = vadd.f32 %v1194, %v1258
        %v1277 = vadd.f32 %v1195, %v1254
        %v1278 = vadd.f32 %v1196, %v1258
        %v1279 = vadd.f32 %v1197, %v1254
        %v1280 = vadd.f32 %v1198, %v1258
        %v1281 = vadd.f32 %v1199, %v1254
        %v1282 = vadd.f32 %v1200, %v1258
        %v1283 = vadd.f32 %v1201, %v1254
        %v1284 = vadd.f32 %v1202, %v1258
        %v1285 = vadd.f32 %v1203, %v1254
        %v1286 = vadd.f32 %v1204, %v1258
        %v1287 = vadd.f32 %v1205, %v1254
        %v1288 = vadd.f32 %v1206, %v1258
        %v1289 = vadd.f32 %v1207, %v1254
        %v1290 = vadd.f32 %v1208, %v1258
        %v1291 = vadd.f32 %v1209, %v1254
        %v1292 = vadd.f32 %v1210, %v1258
        %v1293 = vadd.f32 %v1211, %v1254
        %v1294 = vadd.f32 %v1212, %v1258
        %v1295 = vadd.f32 %v1213, %v1254
        %v1296 = vadd.f32 %v1214, %v1258
        %v1297 = vadd.f32 %v1215, %v1254
        %v1298 = vadd.f32 %v1216, %v1258
        %v1299 = vadd.f32 %v1217, %v1254
        %v1300 = vadd.f32 %v1218, %v1258
        %v1301 = vadd.f32 %v1219, %v1254
        %v1302 = vadd.f32 %v1220, %v1258
        %v1303 = vadd.f32 %v1221, %v1254
        %v1304 = vadd.f32 %v1222, %v1258
        %v1305 = vadd.f32 %v1223, %v1254
        %v1306 = vadd.f32 %v1224, %v1258
        %v1307 = vadd.f32 %v1225, %v1254
        %v1308 = vadd.f32 %v1226, %v1258
        %v1309 = vadd.f32 %v1227, %v1254
        %v1310 = vadd.f32 %v1228, %v1258
        %v1311 = vadd.f32 %v1229, %v1254
        %v1312 = vadd.f32 %v1230, %v1258
        %v1313 = vadd.f32 %v1231, %v1254
        %v1314 = vadd.f32 %v1232, %v1258
        %v1315 = vadd.f32 %v1233, %v1254
        %v1316 = vadd.f32 %v1234, %v1258
        %v1317 = vadd.f32 %v1235, %v1254
        %v1318 = vadd.f32 %v1236, %v1258
        %v1319 = vadd.f32 %v1237, %v1254
        %v1320 = vadd.f32 %v1238, %v1258
        %v1321 = vadd.f32 %v1239, %v1254
        %v1322 = vadd.f32 %v1240, %v1258
        %v1323 = vxor.u32 %v1260, 2147483648
        %v1324 = vxor.u32 %v1262, 2147483648
        %v1325 = vxor.u32 %v1264, 2147483648
        %v1326 = vxor.u32 %v1266, 2147483648
        %v1327 = vxor.u32 %v1268, 2147483648
        %v1328 = vxor.u32 %v1270, 2147483648
        %v1329 = vxor.u32 %v1272, 2147483648
        %v1330 = vxor.u32 %v1274, 2147483648
        %v1331 = vxor.u32 %v1276, 2147483648
        %v1332 = vxor.u32 %v1278, 2147483648
        %v1333 = vxor.u32 %v1280, 2147483648
        %v1334 = vxor.u32 %v1282, 2147483648
        %v1335 = vxor.u32 %v1284, 2147483648
        %v1336 = vxor.u32 %v1286, 2147483648
        %v1337 = vxor.u32 %v1288, 2147483648
        %v1338 = vxor.u32 %v1290, 2147483648
        %v1339 = vxor.u32 %v1292, 2147483648
        %v1340 = vxor.u32 %v1294, 2147483648
        %v1341 = vxor.u32 %v1296, 2147483648
        %v1342 = vxor.u32 %v1298, 2147483648
        %v1343 = vxor.u32 %v1300, 2147483648
        %v1344 = vxor.u32 %v1302, 2147483648
        %v1345 = vxor.u32 %v1304, 2147483648
        %v1346 = vxor.u32 %v1306, 2147483648
        %v1347 = vxor.u32 %v1308, 2147483648
        %v1348 = vxor.u32 %v1310, 2147483648
        %v1349 = vxor.u32 %v1312, 2147483648
        %v1350 = vxor.u32 %v1314, 2147483648
        %v1351 = vxor.u32 %v1316, 2147483648
        %v1352 = vxor.u32 %v1318, 2147483648
        %v1353 = vxor.u32 %v1320, 2147483648
        %v1354 = vxor.u32 %v1322, 2147483648
        %v1355 = vmul.f32 %v1323, 1.442695
        %v1356 = vpow.pop %v1355
        %v1357 = vmul.f32 %v1324, 1.442695
        %v1358 = vpow.pop %v1357
        %v1359 = vmul.f32 %v1325, 1.442695
        %v1360 = vpow.pop %v1359
        %v1361 = vmul.f32 %v1326, 1.442695
        %v1362 = vpow.pop %v1361
        %v1363 = vmul.f32 %v1327, 1.442695
        %v1364 = vpow.pop %v1363
        %v1365 = vmul.f32 %v1328, 1.442695
        %v1366 = vpow.pop %v1365
        %v1367 = vmul.f32 %v1329, 1.442695
        %v1368 = vpow.pop %v1367
        %v1369 = vmul.f32 %v1330, 1.442695
        %v1370 = vpow.pop %v1369
        %v1371 = vmul.f32 %v1331, 1.442695
        %v1372 = vpow.pop %v1371
        %v1373 = vmul.f32 %v1332, 1.442695
        %v1374 = vpow.pop %v1373
        %v1375 = vmul.f32 %v1333, 1.442695
        %v1376 = vpow.pop %v1375
        %v1377 = vmul.f32 %v1334, 1.442695
        %v1378 = vpow.pop %v1377
        %v1379 = vmul.f32 %v1335, 1.442695
        %v1380 = vpow.pop %v1379
        %v1381 = vmul.f32 %v1336, 1.442695
        %v1382 = vpow.pop %v1381
        %v1383 = vmul.f32 %v1337, 1.442695
        %v1384 = vpow.pop %v1383
        %v1385 = vmul.f32 %v1338, 1.442695
        %v1386 = vpow.pop %v1385
        %v1387 = vmul.f32 %v1339, 1.442695
        %v1388 = vpow.pop %v1387
        %v1389 = vmul.f32 %v1340, 1.442695
        %v1390 = vpow.pop %v1389
        %v1391 = vmul.f32 %v1341, 1.442695
        %v1392 = vpow.pop %v1391
        %v1393 = vmul.f32 %v1342, 1.442695
        %v1394 = vpow.pop %v1393
        %v1395 = vmul.f32 %v1343, 1.442695
        %v1396 = vpow.pop %v1395
        %v1397 = vmul.f32 %v1344, 1.442695
        %v1398 = vpow.pop %v1397
        %v1399 = vmul.f32 %v1345, 1.442695
        %v1400 = vpow.pop %v1399
        %v1401 = vmul.f32 %v1346, 1.442695
        %v1402 = vpow.pop %v1401
        %v1403 = vmul.f32 %v1347, 1.442695
        %v1404 = vpow.pop %v1403
        %v1405 = vmul.f32 %v1348, 1.442695
        %v1406 = vpow.pop %v1405
        %v1407 = vmul.f32 %v1349, 1.442695
        %v1408 = vpow.pop %v1407
        %v1409 = vmul.f32 %v1350, 1.442695
        %v1410 = vpow.pop %v1409
        %v1411 = vmul.f32 %v1351, 1.442695
        %v1412 = vpow.pop %v1411
        %v1413 = vmul.f32 %v1352, 1.442695
        %v1414 = vpow.pop %v1413
        %v1415 = vmul.f32 %v1353, 1.442695
        %v1416 = vpow.pop %v1415
        %v1417 = vmul.f32 %v1354, 1.442695
        %v1418 = vpow.pop %v1417
        %v1419 = vadd.f32 %v1356, 1.0
        %v1420 = vadd.f32 %v1358, 1.0
        %v1421 = vadd.f32 %v1360, 1.0
        %v1422 = vadd.f32 %v1362, 1.0
        %v1423 = vadd.f32 %v1364, 1.0
        %v1424 = vadd.f32 %v1366, 1.0
        %v1425 = vadd.f32 %v1368, 1.0
        %v1426 = vadd.f32 %v1370, 1.0
        %v1427 = vadd.f32 %v1372, 1.0
        %v1428 = vadd.f32 %v1374, 1.0
        %v1429 = vadd.f32 %v1376, 1.0
        %v1430 = vadd.f32 %v1378, 1.0
        %v1431 = vadd.f32 %v1380, 1.0
        %v1432 = vadd.f32 %v1382, 1.0
        %v1433 = vadd.f32 %v1384, 1.0
        %v1434 = vadd.f32 %v1386, 1.0
        %v1435 = vadd.f32 %v1388, 1.0
        %v1436 = vadd.f32 %v1390, 1.0
        %v1437 = vadd.f32 %v1392, 1.0
        %v1438 = vadd.f32 %v1394, 1.0
        %v1439 = vadd.f32 %v1396, 1.0
        %v1440 = vadd.f32 %v1398, 1.0
        %v1441 = vadd.f32 %v1400, 1.0
        %v1442 = vadd.f32 %v1402, 1.0
        %v1443 = vadd.f32 %v1404, 1.0
        %v1444 = vadd.f32 %v1406, 1.0
        %v1445 = vadd.f32 %v1408, 1.0
        %v1446 = vadd.f32 %v1410, 1.0
        %v1447 = vadd.f32 %v1412, 1.0
        %v1448 = vadd.f32 %v1414, 1.0
        %v1449 = vadd.f32 %v1416, 1.0
        %v1450 = vadd.f32 %v1418, 1.0
        %v1451 = vrcp.pop %v1419
        %v1452 = vmul.f32 1.0, %v1451
        %v1453 = vrcp.pop %v1420
        %v1454 = vmul.f32 1.0, %v1453
        %v1455 = vrcp.pop %v1421
        %v1456 = vmul.f32 1.0, %v1455
        %v1457 = vrcp.pop %v1422
        %v1458 = vmul.f32 1.0, %v1457
        %v1459 = vrcp.pop %v1423
        %v1460 = vmul.f32 1.0, %v1459
        %v1461 = vrcp.pop %v1424
        %v1462 = vmul.f32 1.0, %v1461
        %v1463 = vrcp.pop %v1425
        %v1464 = vmul.f32 1.0, %v1463
        %v1465 = vrcp.pop %v1426
        %v1466 = vmul.f32 1.0, %v1465
        %v1467 = vrcp.pop %v1427
        %v1468 = vmul.f32 1.0, %v1467
        %v1469 = vrcp.pop %v1428
        %v1470 = vmul.f32 1.0, %v1469
        %v1471 = vrcp.pop %v1429
        %v1472 = vmul.f32 1.0, %v1471
        %v1473 = vrcp.pop %v1430
        %v1474 = vmul.f32 1.0, %v1473
        %v1475 = vrcp.pop %v1431
        %v1476 = vmul.f32 1.0, %v1475
        %v1477 = vrcp.pop %v1432
        %v1478 = vmul.f32 1.0, %v1477
        %v1479 = vrcp.pop %v1433
        %v1480 = vmul.f32 1.0, %v1479
        %v1481 = vrcp.pop %v1434
        %v1482 = vmul.f32 1.0, %v1481
        %v1483 = vrcp.pop %v1435
        %v1484 = vmul.f32 1.0, %v1483
        %v1485 = vrcp.pop %v1436
        %v1486 = vmul.f32 1.0, %v1485
        %v1487 = vrcp.pop %v1437
        %v1488 = vmul.f32 1.0, %v1487
        %v1489 = vrcp.pop %v1438
        %v1490 = vmul.f32 1.0, %v1489
        %v1491 = vrcp.pop %v1439
        %v1492 = vmul.f32 1.0, %v1491
        %v1493 = vrcp.pop %v1440
        %v1494 = vmul.f32 1.0, %v1493
        %v1495 = vrcp.pop %v1441
        %v1496 = vmul.f32 1.0, %v1495
        %v1497 = vrcp.pop %v1442
        %v1498 = vmul.f32 1.0, %v1497
        %v1499 = vrcp.pop %v1443
        %v1500 = vmul.f32 1.0, %v1499
        %v1501 = vrcp.pop %v1444
        %v1502 = vmul.f32 1.0, %v1501
        %v1503 = vrcp.pop %v1445
        %v1504 = vmul.f32 1.0, %v1503
        %v1505 = vrcp.pop %v1446
        %v1506 = vmul.f32 1.0, %v1505
        %v1507 = vrcp.pop %v1447
        %v1508 = vmul.f32 1.0, %v1507
        %v1509 = vrcp.pop %v1448
        %v1510 = vmul.f32 1.0, %v1509
        %v1511 = vrcp.pop %v1449
        %v1512 = vmul.f32 1.0, %v1511
        %v1513 = vrcp.pop %v1450
        %v1514 = vmul.f32 1.0, %v1513
        %v1515 = vmul.f32 %v1452, %v1259
        %v1516 = vmul.f32 %v1454, %v1261
        %v1517 = vmul.f32 %v1456, %v1263
        %v1518 = vmul.f32 %v1458, %v1265
        %v1519 = vmul.f32 %v1460, %v1267
        %v1520 = vmul.f32 %v1462, %v1269
        %v1521 = vmul.f32 %v1464, %v1271
        %v1522 = vmul.f32 %v1466, %v1273
        %v1523 = vmul.f32 %v1468, %v1275
        %v1524 = vmul.f32 %v1470, %v1277
        %v1525 = vmul.f32 %v1472, %v1279
        %v1526 = vmul.f32 %v1474, %v1281
        %v1527 = vmul.f32 %v1476, %v1283
        %v1528 = vmul.f32 %v1478, %v1285
        %v1529 = vmul.f32 %v1480, %v1287
        %v1530 = vmul.f32 %v1482, %v1289
        %v1531 = vmul.f32 %v1484, %v1291
        %v1532 = vmul.f32 %v1486, %v1293
        %v1533 = vmul.f32 %v1488, %v1295
        %v1534 = vmul.f32 %v1490, %v1297
        %v1535 = vmul.f32 %v1492, %v1299
        %v1536 = vmul.f32 %v1494, %v1301
        %v1537 = vmul.f32 %v1496, %v1303
        %v1538 = vmul.f32 %v1498, %v1305
        %v1539 = vmul.f32 %v1500, %v1307
        %v1540 = vmul.f32 %v1502, %v1309
        %v1541 = vmul.f32 %v1504, %v1311
        %v1542 = vmul.f32 %v1506, %v1313
        %v1543 = vmul.f32 %v1508, %v1315
        %v1544 = vmul.f32 %v1510, %v1317
        %v1545 = vmul.f32 %v1512, %v1319
        %v1546 = vmul.f32 %v1514, %v1321
        %v1547 = vpack.c.bf16 %v1516, %v1515
        %v1548 = vpack.c.bf16 %v1518, %v1517
        %v1549 = vpack.c.bf16 %v1520, %v1519
        %v1550 = vpack.c.bf16 %v1522, %v1521
        %v1551 = vpack.c.bf16 %v1524, %v1523
        %v1552 = vpack.c.bf16 %v1526, %v1525
        %v1553 = vpack.c.bf16 %v1528, %v1527
        %v1554 = vpack.c.bf16 %v1530, %v1529
        %v1555 = vpack.c.bf16 %v1532, %v1531
        %v1556 = vpack.c.bf16 %v1534, %v1533
        %v1557 = vpack.c.bf16 %v1536, %v1535
        %v1558 = vpack.c.bf16 %v1538, %v1537
        %v1559 = vpack.c.bf16 %v1540, %v1539
        %v1560 = vpack.c.bf16 %v1542, %v1541
        %v1561 = vpack.c.bf16 %v1544, %v1543
        %v1562 = vpack.c.bf16 %v1546, %v1545
        %v1563 = vld [vmem:[#allocation8] sm:$0xf]
        %v1564 = vld [vmem:[#allocation8 + $0x4] sm:$0xf]
        %v1565 = vld [vmem:[#allocation8 + $0x8] sm:$0xf]
        %v1566 = vld [vmem:[#allocation8 + $0xc] sm:$0xf]
        %v1567 = vld [vmem:[#allocation8 + $0x10] sm:$0xf]
        %v1568 = vld [vmem:[#allocation8 + $0x14] sm:$0xf]
        %v1569 = vld [vmem:[#allocation8 + $0x18] sm:$0xf]
        %v1570 = vld [vmem:[#allocation8 + $0x1c] sm:$0xf]
        %v1571 = vld [vmem:[#allocation8 + $0x20] sm:$0xf]
        %v1572 = vld [vmem:[#allocation8 + $0x24] sm:$0xf]
        %v1573 = vld [vmem:[#allocation8 + $0x28] sm:$0xf]
        %v1574 = vld [vmem:[#allocation8 + $0x2c] sm:$0xf]
        %v1575 = vld [vmem:[#allocation8 + $0x30] sm:$0xf]
        %v1576 = vld [vmem:[#allocation8 + $0x34] sm:$0xf]
        %v1577 = vld [vmem:[#allocation8 + $0x38] sm:$0xf]
        %v1578 = vld [vmem:[#allocation8 + $0x3c] sm:$0xf]
        %v1579 = vlaneseq
        %v1580 = vshrl.u32 %v1579, 7
        %v1581 = vsub.s32 0, %v1580
        %v1582 = vrot.slane %v337, %v1581
        %v1599 = vunpack.c.l.b16 %v1563
        %v1600 = vunpack.c.l.b16 %v1564
        %v1601 = vunpack.c.l.b16 %v1565
        %v1602 = vunpack.c.l.b16 %v1566
        %v1603 = vunpack.c.l.b16 %v1567
        %v1604 = vunpack.c.l.b16 %v1568
        %v1605 = vunpack.c.l.b16 %v1569
        %v1606 = vunpack.c.l.b16 %v1570
        %v1607 = vunpack.c.l.b16 %v1571
        %v1608 = vunpack.c.l.b16 %v1572
        %v1609 = vunpack.c.l.b16 %v1573
        %v1610 = vunpack.c.l.b16 %v1574
        %v1611 = vunpack.c.l.b16 %v1575
        %v1612 = vunpack.c.l.b16 %v1576
        %v1613 = vunpack.c.l.b16 %v1577
        %v1614 = vunpack.c.l.b16 %v1578
        %v1615 = vpack.c.b16 %v1600, %v1599
        %v1616 = vpack.c.b16 %v1602, %v1601
        %v1617 = vpack.c.b16 %v1604, %v1603
        %v1618 = vpack.c.b16 %v1606, %v1605
        %v1619 = vpack.c.b16 %v1608, %v1607
        %v1620 = vpack.c.b16 %v1610, %v1609
        %v1621 = vpack.c.b16 %v1612, %v1611
        %v1622 = vpack.c.b16 %v1614, %v1613
        %1631 = vmatprep.subr.bf16.mxu0 0
        %1632 = vmatpush1.bf16.msra.mxu0 %v1615
        %1633 = vmatprep.subr.bf16.mxu0 0
        %1634 = vmatpush1.bf16.msra.mxu0 %v1616
        %1635 = vmatprep.subr.bf16.mxu0 0
        %1636 = vmatpush1.bf16.msra.mxu0 %v1617
        %1637 = vmatprep.subr.bf16.mxu0 0
        %1638 = vmatpush1.bf16.msra.mxu0 %v1618
        %1639 = vmatprep.subr.bf16.mxu0 0
        %1640 = vmatpush1.bf16.msra.mxu0 %v1619
        %1641 = vmatprep.subr.bf16.mxu0 0
        %1642 = vmatpush1.bf16.msra.mxu0 %v1620
        %1643 = vmatprep.subr.bf16.mxu0 0
        %1644 = vmatpush1.bf16.msra.mxu0 %v1621
        %1645 = vmatprep.subr.bf16.mxu0 0
        %1646 = vmatpush1.bf16.msra.mxu0 %v1622
        %1647 = vmatprep.subr.bf16.mxu0 0
        %1648 = vmatpush1.bf16.msra.mxu0 0
        %1649 = vmatprep.subr.bf16.mxu0 0
        %1650 = vmatpush1.bf16.msra.mxu0 0
        %1651 = vmatprep.subr.bf16.mxu0 0
        %1652 = vmatpush1.bf16.msra.mxu0 0
        %1653 = vmatprep.subr.bf16.mxu0 0
        %1654 = vmatpush1.bf16.msra.mxu0 0
        %1655 = vmatprep.subr.bf16.mxu0 0
        %1656 = vmatpush1.bf16.msra.mxu0 0
        %1657 = vmatprep.subr.bf16.mxu0 0
        %1658 = vmatpush1.bf16.msra.mxu0 0
        %1659 = vmatprep.subr.bf16.mxu0 0
        %1660 = vmatpush1.bf16.msra.mxu0 0
        %1661 = vmatprep.subr.bf16.mxu0 0
        %1662 = vmatpush1.bf16.msra.mxu0 0
        %1663 = vmatprep.mubr.bf16.mxu0 0
        %1664 = vmatmul.mubr.bf16.gmra.mrb[0].mxu0 %v1547
        %v1665 = vpop.f32.mrb[0].mxu0
        %v1666 = vadd.f32 %v1582, %v1665
        %v1667 = vpop.f32.mrb[0].mxu0
        %v1668 = vpop.f32.mrb[0].mxu0
        %v1669 = vadd.f32 %v1582, %v1668
        %v1670 = vpop.f32.mrb[0].mxu0
        %1671 = vmatprep.mubr.bf16.mxu0 0
        %1672 = vmatmul.mubr.bf16.gmra.mrb[0].mxu0 %v1548
        %v1673 = vpop.f32.mrb[0].mxu0
        %v1674 = vadd.f32 %v1582, %v1673
        %v1675 = vpop.f32.mrb[0].mxu0
        %v1676 = vpop.f32.mrb[0].mxu0
        %v1677 = vadd.f32 %v1582, %v1676
        %v1678 = vpop.f32.mrb[0].mxu0
        %1679 = vmatprep.mubr.bf16.mxu0 0
        %1680 = vmatmul.mubr.bf16.gmra.mrb[0].mxu0 %v1549
        %v1681 = vpop.f32.mrb[0].mxu0
        %v1682 = vadd.f32 %v1582, %v1681
        %v1683 = vpop.f32.mrb[0].mxu0
        %v1684 = vpop.f32.mrb[0].mxu0
        %v1685 = vadd.f32 %v1582, %v1684
        %v1686 = vpop.f32.mrb[0].mxu0
        %1687 = vmatprep.mubr.bf16.mxu0 0
        %1688 = vmatmul.mubr.bf16.gmra.mrb[0].mxu0 %v1550
        %v1689 = vpop.f32.mrb[0].mxu0
        %v1690 = vadd.f32 %v1582, %v1689
        %v1691 = vpop.f32.mrb[0].mxu0
        %v1692 = vpop.f32.mrb[0].mxu0
        %v1693 = vadd.f32 %v1582, %v1692
        %v1694 = vpop.f32.mrb[0].mxu0
        %1695 = vmatprep.mubr.bf16.mxu0 0
        %1696 = vmatmul.mubr.bf16.gmra.mrb[0].mxu0 %v1551
        %v1697 = vpop.f32.mrb[0].mxu0
        %v1698 = vadd.f32 %v1582, %v1697
        %v1699 = vpop.f32.mrb[0].mxu0
        %v1700 = vpop.f32.mrb[0].mxu0
        %v1701 = vadd.f32 %v1582, %v1700
        %v1702 = vpop.f32.mrb[0].mxu0
        %1703 = vmatprep.mubr.bf16.mxu0 0
        %1704 = vmatmul.mubr.bf16.gmra.mrb[0].mxu0 %v1552
        %v1705 = vpop.f32.mrb[0].mxu0
        %v1706 = vadd.f32 %v1582, %v1705
        %v1707 = vpop.f32.mrb[0].mxu0
        %v1708 = vpop.f32.mrb[0].mxu0
        %v1709 = vadd.f32 %v1582, %v1708
        %v1710 = vpop.f32.mrb[0].mxu0
        %1711 = vmatprep.mubr.bf16.mxu0 0
        %1712 = vmatmul.mubr.bf16.gmra.mrb[0].mxu0 %v1553
        %v1713 = vpop.f32.mrb[0].mxu0
        %v1714 = vadd.f32 %v1582, %v1713
        %v1715 = vpop.f32.mrb[0].mxu0
        %v1716 = vpop.f32.mrb[0].mxu0
        %v1717 = vadd.f32 %v1582, %v1716
        %v1718 = vpop.f32.mrb[0].mxu0
        %1719 = vmatprep.mubr.bf16.mxu0 0
        %1720 = vmatmul.mubr.bf16.gmra.mrb[0].mxu0 %v1554
        %v1721 = vpop.f32.mrb[0].mxu0
        %v1722 = vadd.f32 %v1582, %v1721
        %v1723 = vpop.f32.mrb[0].mxu0
        %v1724 = vpop.f32.mrb[0].mxu0
        %v1725 = vadd.f32 %v1582, %v1724
        %v1726 = vpop.f32.mrb[0].mxu0
        %1727 = vmatprep.mubr.bf16.mxu0 0
        %1728 = vmatmul.mubr.bf16.gmra.mrb[0].mxu0 %v1555
        %v1729 = vpop.f32.mrb[0].mxu0
        %v1730 = vadd.f32 %v1582, %v1729
        %v1731 = vpop.f32.mrb[0].mxu0
        %v1732 = vpop.f32.mrb[0].mxu0
        %v1733 = vadd.f32 %v1582, %v1732
        %v1734 = vpop.f32.mrb[0].mxu0
        %1735 = vmatprep.mubr.bf16.mxu0 0
        %1736 = vmatmul.mubr.bf16.gmra.mrb[0].mxu0 %v1556
        %v1737 = vpop.f32.mrb[0].mxu0
        %v1738 = vadd.f32 %v1582, %v1737
        %v1739 = vpop.f32.mrb[0].mxu0
        %v1740 = vpop.f32.mrb[0].mxu0
        %v1741 = vadd.f32 %v1582, %v1740
        %v1742 = vpop.f32.mrb[0].mxu0
        %1743 = vmatprep.mubr.bf16.mxu0 0
        %1744 = vmatmul.mubr.bf16.gmra.mrb[0].mxu0 %v1557
        %v1745 = vpop.f32.mrb[0].mxu0
        %v1746 = vadd.f32 %v1582, %v1745
        %v1747 = vpop.f32.mrb[0].mxu0
        %v1748 = vpop.f32.mrb[0].mxu0
        %v1749 = vadd.f32 %v1582, %v1748
        %v1750 = vpop.f32.mrb[0].mxu0
        %1751 = vmatprep.mubr.bf16.mxu0 0
        %1752 = vmatmul.mubr.bf16.gmra.mrb[0].mxu0 %v1558
        %v1753 = vpop.f32.mrb[0].mxu0
        %v1754 = vadd.f32 %v1582, %v1753
        %v1755 = vpop.f32.mrb[0].mxu0
        %v1756 = vpop.f32.mrb[0].mxu0
        %v1757 = vadd.f32 %v1582, %v1756
        %v1758 = vpop.f32.mrb[0].mxu0
        %1759 = vmatprep.mubr.bf16.mxu0 0
        %1760 = vmatmul.mubr.bf16.gmra.mrb[0].mxu0 %v1559
        %v1761 = vpop.f32.mrb[0].mxu0
        %v1762 = vadd.f32 %v1582, %v1761
        %v1763 = vpop.f32.mrb[0].mxu0
        %v1764 = vpop.f32.mrb[0].mxu0
        %v1765 = vadd.f32 %v1582, %v1764
        %v1766 = vpop.f32.mrb[0].mxu0
        %1767 = vmatprep.mubr.bf16.mxu0 0
        %1768 = vmatmul.mubr.bf16.gmra.mrb[0].mxu0 %v1560
        %v1769 = vpop.f32.mrb[0].mxu0
        %v1770 = vadd.f32 %v1582, %v1769
        %v1771 = vpop.f32.mrb[0].mxu0
        %v1772 = vpop.f32.mrb[0].mxu0
        %v1773 = vadd.f32 %v1582, %v1772
        %v1774 = vpop.f32.mrb[0].mxu0
        %1775 = vmatprep.mubr.bf16.mxu0 0
        %1776 = vmatmul.mubr.bf16.gmra.mrb[0].mxu0 %v1561
        %v1777 = vpop.f32.mrb[0].mxu0
        %v1778 = vadd.f32 %v1582, %v1777
        %v1779 = vpop.f32.mrb[0].mxu0
        %v1780 = vpop.f32.mrb[0].mxu0
        %v1781 = vadd.f32 %v1582, %v1780
        %v1782 = vpop.f32.mrb[0].mxu0
        %1783 = vmatprep.mubr.bf16.mxu0 0
        %1784 = vmatmul.mubr.bf16.gmra.mrb[0].mxu0 %v1562
        %v1785 = vpop.f32.mrb[0].mxu0
        %v1786 = vadd.f32 %v1582, %v1785
        %v1787 = vpop.f32.mrb[0].mxu0
        %v1788 = vpop.f32.mrb[0].mxu0
        %v1789 = vadd.f32 %v1582, %v1788
        %v1790 = vpop.f32.mrb[0].mxu0
        %1791 = vdwg.mxu0
        %1792 = vadd.xlane.f32.xlu0 %v1666
        %v1793 = vpop.xlane.xlu0 %1792
        %1794 = vadd.xlane.f32.xlu0 %v1669
        %v1795 = vpop.xlane.xlu0 %1794
        %1796 = vadd.xlane.f32.xlu0 %v1674
        %v1797 = vpop.xlane.xlu0 %1796
        %1798 = vadd.xlane.f32.xlu0 %v1677
        %v1799 = vpop.xlane.xlu0 %1798
        %1800 = vadd.xlane.f32.xlu0 %v1682
        %v1801 = vpop.xlane.xlu0 %1800
        %1802 = vadd.xlane.f32.xlu0 %v1685
        %v1803 = vpop.xlane.xlu0 %1802
        %1804 = vadd.xlane.f32.xlu0 %v1690
        %v1805 = vpop.xlane.xlu0 %1804
        %1806 = vadd.xlane.f32.xlu0 %v1693
        %v1807 = vpop.xlane.xlu0 %1806
        %1808 = vadd.xlane.f32.xlu0 %v1698
        %v1809 = vpop.xlane.xlu0 %1808
        %1810 = vadd.xlane.f32.xlu0 %v1701
        %v1811 = vpop.xlane.xlu0 %1810
        %1812 = vadd.xlane.f32.xlu0 %v1706
        %v1813 = vpop.xlane.xlu0 %1812
        %1814 = vadd.xlane.f32.xlu0 %v1709
        %v1815 = vpop.xlane.xlu0 %1814
        %1816 = vadd.xlane.f32.xlu0 %v1714
        %v1817 = vpop.xlane.xlu0 %1816
        %1818 = vadd.xlane.f32.xlu0 %v1717
        %v1819 = vpop.xlane.xlu0 %1818
        %1820 = vadd.xlane.f32.xlu0 %v1722
        %v1821 = vpop.xlane.xlu0 %1820
        %1822 = vadd.xlane.f32.xlu0 %v1725
        %v1823 = vpop.xlane.xlu0 %1822
        %1824 = vadd.xlane.f32.xlu0 %v1730
        %v1825 = vpop.xlane.xlu0 %1824
        %1826 = vadd.xlane.f32.xlu0 %v1733
        %v1827 = vpop.xlane.xlu0 %1826
        %1828 = vadd.xlane.f32.xlu0 %v1738
        %v1829 = vpop.xlane.xlu0 %1828
        %1830 = vadd.xlane.f32.xlu0 %v1741
        %v1831 = vpop.xlane.xlu0 %1830
        %1832 = vadd.xlane.f32.xlu0 %v1746
        %v1833 = vpop.xlane.xlu0 %1832
        %1834 = vadd.xlane.f32.xlu0 %v1749
        %v1835 = vpop.xlane.xlu0 %1834
        %1836 = vadd.xlane.f32.xlu0 %v1754
        %v1837 = vpop.xlane.xlu0 %1836
        %1838 = vadd.xlane.f32.xlu0 %v1757
        %v1839 = vpop.xlane.xlu0 %1838
        %1840 = vadd.xlane.f32.xlu0 %v1762
        %v1841 = vpop.xlane.xlu0 %1840
        %1842 = vadd.xlane.f32.xlu0 %v1765
        %v1843 = vpop.xlane.xlu0 %1842
        %1844 = vadd.xlane.f32.xlu0 %v1770
        %v1845 = vpop.xlane.xlu0 %1844
        %1846 = vadd.xlane.f32.xlu0 %v1773
        %v1847 = vpop.xlane.xlu0 %1846
        %1848 = vadd.xlane.f32.xlu0 %v1778
        %v1849 = vpop.xlane.xlu0 %1848
        %1850 = vadd.xlane.f32.xlu0 %v1781
        %v1851 = vpop.xlane.xlu0 %1850
        %1852 = vadd.xlane.f32.xlu0 %v1786
        %v1853 = vpop.xlane.xlu0 %1852
        %1854 = vadd.xlane.f32.xlu0 %v1789
        %v1855 = vpop.xlane.xlu0 %1854
        %v1856 = vmul.f32 %v1793, 0.0078125
        %v1857 = vmul.f32 %v1795, 0.0078125
        %v1858 = vmul.f32 %v1797, 0.0078125
        %v1859 = vmul.f32 %v1799, 0.0078125
        %v1860 = vmul.f32 %v1801, 0.0078125
        %v1861 = vmul.f32 %v1803, 0.0078125
        %v1862 = vmul.f32 %v1805, 0.0078125
        %v1863 = vmul.f32 %v1807, 0.0078125
        %v1864 = vmul.f32 %v1809, 0.0078125
        %v1865 = vmul.f32 %v1811, 0.0078125
        %v1866 = vmul.f32 %v1813, 0.0078125
        %v1867 = vmul.f32 %v1815, 0.0078125
        %v1868 = vmul.f32 %v1817, 0.0078125
        %v1869 = vmul.f32 %v1819, 0.0078125
        %v1870 = vmul.f32 %v1821, 0.0078125
        %v1871 = vmul.f32 %v1823, 0.0078125
        %v1872 = vmul.f32 %v1825, 0.0078125
        %v1873 = vmul.f32 %v1827, 0.0078125
        %v1874 = vmul.f32 %v1829, 0.0078125
        %v1875 = vmul.f32 %v1831, 0.0078125
        %v1876 = vmul.f32 %v1833, 0.0078125
        %v1877 = vmul.f32 %v1835, 0.0078125
        %v1878 = vmul.f32 %v1837, 0.0078125
        %v1879 = vmul.f32 %v1839, 0.0078125
        %v1880 = vmul.f32 %v1841, 0.0078125
        %v1881 = vmul.f32 %v1843, 0.0078125
        %v1882 = vmul.f32 %v1845, 0.0078125
        %v1883 = vmul.f32 %v1847, 0.0078125
        %v1884 = vmul.f32 %v1849, 0.0078125
        %v1885 = vmul.f32 %v1851, 0.0078125
        %v1886 = vmul.f32 %v1853, 0.0078125
        %v1887 = vmul.f32 %v1855, 0.0078125
        %v1888 = vmul.f32 %v1666, %v1666
        %v1889 = vmul.f32 %v1669, %v1669
        %v1890 = vmul.f32 %v1674, %v1674
        %v1891 = vmul.f32 %v1677, %v1677
        %v1892 = vmul.f32 %v1682, %v1682
        %v1893 = vmul.f32 %v1685, %v1685
        %v1894 = vmul.f32 %v1690, %v1690
        %v1895 = vmul.f32 %v1693, %v1693
        %v1896 = vmul.f32 %v1698, %v1698
        %v1897 = vmul.f32 %v1701, %v1701
        %v1898 = vmul.f32 %v1706, %v1706
        %v1899 = vmul.f32 %v1709, %v1709
        %v1900 = vmul.f32 %v1714, %v1714
        %v1901 = vmul.f32 %v1717, %v1717
        %v1902 = vmul.f32 %v1722, %v1722
        %v1903 = vmul.f32 %v1725, %v1725
        %v1904 = vmul.f32 %v1730, %v1730
        %v1905 = vmul.f32 %v1733, %v1733
        %v1906 = vmul.f32 %v1738, %v1738
        %v1907 = vmul.f32 %v1741, %v1741
        %v1908 = vmul.f32 %v1746, %v1746
        %v1909 = vmul.f32 %v1749, %v1749
        %v1910 = vmul.f32 %v1754, %v1754
        %v1911 = vmul.f32 %v1757, %v1757
        %v1912 = vmul.f32 %v1762, %v1762
        %v1913 = vmul.f32 %v1765, %v1765
        %v1914 = vmul.f32 %v1770, %v1770
        %v1915 = vmul.f32 %v1773, %v1773
        %v1916 = vmul.f32 %v1778, %v1778
        %v1917 = vmul.f32 %v1781, %v1781
        %v1918 = vmul.f32 %v1786, %v1786
        %v1919 = vmul.f32 %v1789, %v1789
        %1920 = vadd.xlane.f32.xlu0 %v1888
        %v1921 = vpop.xlane.xlu0 %1920
        %1922 = vadd.xlane.f32.xlu0 %v1889
        %v1923 = vpop.xlane.xlu0 %1922
        %1924 = vadd.xlane.f32.xlu0 %v1890
        %v1925 = vpop.xlane.xlu0 %1924
        %1926 = vadd.xlane.f32.xlu0 %v1891
        %v1927 = vpop.xlane.xlu0 %1926
        %1928 = vadd.xlane.f32.xlu0 %v1892
        %v1929 = vpop.xlane.xlu0 %1928
        %1930 = vadd.xlane.f32.xlu0 %v1893
        %v1931 = vpop.xlane.xlu0 %1930
        %1932 = vadd.xlane.f32.xlu0 %v1894
        %v1933 = vpop.xlane.xlu0 %1932
        %1934 = vadd.xlane.f32.xlu0 %v1895
        %v1935 = vpop.xlane.xlu0 %1934
        %1936 = vadd.xlane.f32.xlu0 %v1896
        %v1937 = vpop.xlane.xlu0 %1936
        %1938 = vadd.xlane.f32.xlu0 %v1897
        %v1939 = vpop.xlane.xlu0 %1938
        %1940 = vadd.xlane.f32.xlu0 %v1898
        %v1941 = vpop.xlane.xlu0 %1940
        %1942 = vadd.xlane.f32.xlu0 %v1899
        %v1943 = vpop.xlane.xlu0 %1942
        %1944 = vadd.xlane.f32.xlu0 %v1900
        %v1945 = vpop.xlane.xlu0 %1944
        %1946 = vadd.xlane.f32.xlu0 %v1901
        %v1947 = vpop.xlane.xlu0 %1946
        %1948 = vadd.xlane.f32.xlu0 %v1902
        %v1949 = vpop.xlane.xlu0 %1948
        %1950 = vadd.xlane.f32.xlu0 %v1903
        %v1951 = vpop.xlane.xlu0 %1950
        %1952 = vadd.xlane.f32.xlu0 %v1904
        %v1953 = vpop.xlane.xlu0 %1952
        %1954 = vadd.xlane.f32.xlu0 %v1905
        %v1955 = vpop.xlane.xlu0 %1954
        %1956 = vadd.xlane.f32.xlu0 %v1906
        %v1957 = vpop.xlane.xlu0 %1956
        %1958 = vadd.xlane.f32.xlu0 %v1907
        %v1959 = vpop.xlane.xlu0 %1958
        %1960 = vadd.xlane.f32.xlu0 %v1908
        %v1961 = vpop.xlane.xlu0 %1960
        %1962 = vadd.xlane.f32.xlu0 %v1909
        %v1963 = vpop.xlane.xlu0 %1962
        %1964 = vadd.xlane.f32.xlu0 %v1910
        %v1965 = vpop.xlane.xlu0 %1964
        %1966 = vadd.xlane.f32.xlu0 %v1911
        %v1967 = vpop.xlane.xlu0 %1966
        %1968 = vadd.xlane.f32.xlu0 %v1912
        %v1969 = vpop.xlane.xlu0 %1968
        %1970 = vadd.xlane.f32.xlu0 %v1913
        %v1971 = vpop.xlane.xlu0 %1970
        %1972 = vadd.xlane.f32.xlu0 %v1914
        %v1973 = vpop.xlane.xlu0 %1972
        %1974 = vadd.xlane.f32.xlu0 %v1915
        %v1975 = vpop.xlane.xlu0 %1974
        %1976 = vadd.xlane.f32.xlu0 %v1916
        %v1977 = vpop.xlane.xlu0 %1976
        %1978 = vadd.xlane.f32.xlu0 %v1917
        %v1979 = vpop.xlane.xlu0 %1978
        %1980 = vadd.xlane.f32.xlu0 %v1918
        %v1981 = vpop.xlane.xlu0 %1980
        %1982 = vadd.xlane.f32.xlu0 %v1919
        %v1983 = vpop.xlane.xlu0 %1982
        %v1984 = vmul.f32 %v1921, 0.0078125
        %v1985 = vmul.f32 %v1923, 0.0078125
        %v1986 = vmul.f32 %v1925, 0.0078125
        %v1987 = vmul.f32 %v1927, 0.0078125
        %v1988 = vmul.f32 %v1929, 0.0078125
        %v1989 = vmul.f32 %v1931, 0.0078125
        %v1990 = vmul.f32 %v1933, 0.0078125
        %v1991 = vmul.f32 %v1935, 0.0078125
        %v1992 = vmul.f32 %v1937, 0.0078125
        %v1993 = vmul.f32 %v1939, 0.0078125
        %v1994 = vmul.f32 %v1941, 0.0078125
        %v1995 = vmul.f32 %v1943, 0.0078125
        %v1996 = vmul.f32 %v1945, 0.0078125
        %v1997 = vmul.f32 %v1947, 0.0078125
        %v1998 = vmul.f32 %v1949, 0.0078125
        %v1999 = vmul.f32 %v1951, 0.0078125
        %v2000 = vmul.f32 %v1953, 0.0078125
        %v2001 = vmul.f32 %v1955, 0.0078125
        %v2002 = vmul.f32 %v1957, 0.0078125
        %v2003 = vmul.f32 %v1959, 0.0078125
        %v2004 = vmul.f32 %v1961, 0.0078125
        %v2005 = vmul.f32 %v1963, 0.0078125
        %v2006 = vmul.f32 %v1965, 0.0078125
        %v2007 = vmul.f32 %v1967, 0.0078125
        %v2008 = vmul.f32 %v1969, 0.0078125
        %v2009 = vmul.f32 %v1971, 0.0078125
        %v2010 = vmul.f32 %v1973, 0.0078125
        %v2011 = vmul.f32 %v1975, 0.0078125
        %v2012 = vmul.f32 %v1977, 0.0078125
        %v2013 = vmul.f32 %v1979, 0.0078125
        %v2014 = vmul.f32 %v1981, 0.0078125
        %v2015 = vmul.f32 %v1983, 0.0078125
        %v2016 = vmul.f32 %v1856, %v1856
        %v2017 = vmul.f32 %v1857, %v1857
        %v2018 = vmul.f32 %v1858, %v1858
        %v2019 = vmul.f32 %v1859, %v1859
        %v2020 = vmul.f32 %v1860, %v1860
        %v2021 = vmul.f32 %v1861, %v1861
        %v2022 = vmul.f32 %v1862, %v1862
        %v2023 = vmul.f32 %v1863, %v1863
        %v2024 = vmul.f32 %v1864, %v1864
        %v2025 = vmul.f32 %v1865, %v1865
        %v2026 = vmul.f32 %v1866, %v1866
        %v2027 = vmul.f32 %v1867, %v1867
        %v2028 = vmul.f32 %v1868, %v1868
        %v2029 = vmul.f32 %v1869, %v1869
        %v2030 = vmul.f32 %v1870, %v1870
        %v2031 = vmul.f32 %v1871, %v1871
        %v2032 = vmul.f32 %v1872, %v1872
        %v2033 = vmul.f32 %v1873, %v1873
        %v2034 = vmul.f32 %v1874, %v1874
        %v2035 = vmul.f32 %v1875, %v1875
        %v2036 = vmul.f32 %v1876, %v1876
        %v2037 = vmul.f32 %v1877, %v1877
        %v2038 = vmul.f32 %v1878, %v1878
        %v2039 = vmul.f32 %v1879, %v1879
        %v2040 = vmul.f32 %v1880, %v1880
        %v2041 = vmul.f32 %v1881, %v1881
        %v2042 = vmul.f32 %v1882, %v1882
        %v2043 = vmul.f32 %v1883, %v1883
        %v2044 = vmul.f32 %v1884, %v1884
        %v2045 = vmul.f32 %v1885, %v1885
        %v2046 = vmul.f32 %v1886, %v1886
        %v2047 = vmul.f32 %v1887, %v1887
        %v2048 = vsub.f32 %v1984, %v2016
        %v2049 = vsub.f32 %v1985, %v2017
        %v2050 = vsub.f32 %v1986, %v2018
        %v2051 = vsub.f32 %v1987, %v2019
        %v2052 = vsub.f32 %v1988, %v2020
        %v2053 = vsub.f32 %v1989, %v2021
        %v2054 = vsub.f32 %v1990, %v2022
        %v2055 = vsub.f32 %v1991, %v2023
        %v2056 = vsub.f32 %v1992, %v2024
        %v2057 = vsub.f32 %v1993, %v2025
        %v2058 = vsub.f32 %v1994, %v2026
        %v2059 = vsub.f32 %v1995, %v2027
        %v2060 = vsub.f32 %v1996, %v2028
        %v2061 = vsub.f32 %v1997, %v2029
        %v2062 = vsub.f32 %v1998, %v2030
        %v2063 = vsub.f32 %v1999, %v2031
        %v2064 = vsub.f32 %v2000, %v2032
        %v2065 = vsub.f32 %v2001, %v2033
        %v2066 = vsub.f32 %v2002, %v2034
        %v2067 = vsub.f32 %v2003, %v2035
        %v2068 = vsub.f32 %v2004, %v2036
        %v2069 = vsub.f32 %v2005, %v2037
        %v2070 = vsub.f32 %v2006, %v2038
        %v2071 = vsub.f32 %v2007, %v2039
        %v2072 = vsub.f32 %v2008, %v2040
        %v2073 = vsub.f32 %v2009, %v2041
        %v2074 = vsub.f32 %v2010, %v2042
        %v2075 = vsub.f32 %v2011, %v2043
        %v2076 = vsub.f32 %v2012, %v2044
        %v2077 = vsub.f32 %v2013, %v2045
        %v2078 = vsub.f32 %v2014, %v2046
        %v2079 = vsub.f32 %v2015, %v2047
        %v2080 = vmax.f32 %v2048, 0.0
        %v2081 = vmax.f32 %v2049, 0.0
        %v2082 = vmax.f32 %v2050, 0.0
        %v2083 = vmax.f32 %v2051, 0.0
        %v2084 = vmax.f32 %v2052, 0.0
        %v2085 = vmax.f32 %v2053, 0.0
        %v2086 = vmax.f32 %v2054, 0.0
        %v2087 = vmax.f32 %v2055, 0.0
        %v2088 = vmax.f32 %v2056, 0.0
        %v2089 = vmax.f32 %v2057, 0.0
        %v2090 = vmax.f32 %v2058, 0.0
        %v2091 = vmax.f32 %v2059, 0.0
        %v2092 = vmax.f32 %v2060, 0.0
        %v2093 = vmax.f32 %v2061, 0.0
        %v2094 = vmax.f32 %v2062, 0.0
        %v2095 = vmax.f32 %v2063, 0.0
        %v2096 = vmax.f32 %v2064, 0.0
        %v2097 = vmax.f32 %v2065, 0.0
        %v2098 = vmax.f32 %v2066, 0.0
        %v2099 = vmax.f32 %v2067, 0.0
        %v2100 = vmax.f32 %v2068, 0.0
        %v2101 = vmax.f32 %v2069, 0.0
        %v2102 = vmax.f32 %v2070, 0.0
        %v2103 = vmax.f32 %v2071, 0.0
        %v2104 = vmax.f32 %v2072, 0.0
        %v2105 = vmax.f32 %v2073, 0.0
        %v2106 = vmax.f32 %v2074, 0.0
        %v2107 = vmax.f32 %v2075, 0.0
        %v2108 = vmax.f32 %v2076, 0.0
        %v2109 = vmax.f32 %v2077, 0.0
        %v2110 = vmax.f32 %v2078, 0.0
        %v2111 = vmax.f32 %v2079, 0.0
        %v2112 = vsub.f32 %v1666, %v1856
        %v2113 = vsub.f32 %v1669, %v1857
        %v2114 = vsub.f32 %v1674, %v1858
        %v2115 = vsub.f32 %v1677, %v1859
        %v2116 = vsub.f32 %v1682, %v1860
        %v2117 = vsub.f32 %v1685, %v1861
        %v2118 = vsub.f32 %v1690, %v1862
        %v2119 = vsub.f32 %v1693, %v1863
        %v2120 = vsub.f32 %v1698, %v1864
        %v2121 = vsub.f32 %v1701, %v1865
        %v2122 = vsub.f32 %v1706, %v1866
        %v2123 = vsub.f32 %v1709, %v1867
        %v2124 = vsub.f32 %v1714, %v1868
        %v2125 = vsub.f32 %v1717, %v1869
        %v2126 = vsub.f32 %v1722, %v1870
        %v2127 = vsub.f32 %v1725, %v1871
        %v2128 = vsub.f32 %v1730, %v1872
        %v2129 = vsub.f32 %v1733, %v1873
        %v2130 = vsub.f32 %v1738, %v1874
        %v2131 = vsub.f32 %v1741, %v1875
        %v2132 = vsub.f32 %v1746, %v1876
        %v2133 = vsub.f32 %v1749, %v1877
        %v2134 = vsub.f32 %v1754, %v1878
        %v2135 = vsub.f32 %v1757, %v1879
        %v2136 = vsub.f32 %v1762, %v1880
        %v2137 = vsub.f32 %v1765, %v1881
        %v2138 = vsub.f32 %v1770, %v1882
        %v2139 = vsub.f32 %v1773, %v1883
        %v2140 = vsub.f32 %v1778, %v1884
        %v2141 = vsub.f32 %v1781, %v1885
        %v2142 = vsub.f32 %v1786, %v1886
        %v2143 = vsub.f32 %v1789, %v1887
        %v2144 = vadd.f32 %v2080, 1e-05
        %v2145 = vadd.f32 %v2081, 1e-05
        %v2146 = vadd.f32 %v2082, 1e-05
        %v2147 = vadd.f32 %v2083, 1e-05
        %v2148 = vadd.f32 %v2084, 1e-05
        %v2149 = vadd.f32 %v2085, 1e-05
        %v2150 = vadd.f32 %v2086, 1e-05
        %v2151 = vadd.f32 %v2087, 1e-05
        %v2152 = vadd.f32 %v2088, 1e-05
        %v2153 = vadd.f32 %v2089, 1e-05
        %v2154 = vadd.f32 %v2090, 1e-05
        %v2155 = vadd.f32 %v2091, 1e-05
        %v2156 = vadd.f32 %v2092, 1e-05
        %v2157 = vadd.f32 %v2093, 1e-05
        %v2158 = vadd.f32 %v2094, 1e-05
        %v2159 = vadd.f32 %v2095, 1e-05
        %v2160 = vadd.f32 %v2096, 1e-05
        %v2161 = vadd.f32 %v2097, 1e-05
        %v2162 = vadd.f32 %v2098, 1e-05
        %v2163 = vadd.f32 %v2099, 1e-05
        %v2164 = vadd.f32 %v2100, 1e-05
        %v2165 = vadd.f32 %v2101, 1e-05
        %v2166 = vadd.f32 %v2102, 1e-05
        %v2167 = vadd.f32 %v2103, 1e-05
        %v2168 = vadd.f32 %v2104, 1e-05
        %v2169 = vadd.f32 %v2105, 1e-05
        %v2170 = vadd.f32 %v2106, 1e-05
        %v2171 = vadd.f32 %v2107, 1e-05
        %v2172 = vadd.f32 %v2108, 1e-05
        %v2173 = vadd.f32 %v2109, 1e-05
        %v2174 = vadd.f32 %v2110, 1e-05
        %v2175 = vadd.f32 %v2111, 1e-05
        %v2176 = vrsqrt.pop %v2144
        %v2177 = vrsqrt.pop %v2145
        %v2178 = vrsqrt.pop %v2146
        %v2179 = vrsqrt.pop %v2147
        %v2180 = vrsqrt.pop %v2148
        %v2181 = vrsqrt.pop %v2149
        %v2182 = vrsqrt.pop %v2150
        %v2183 = vrsqrt.pop %v2151
        %v2184 = vrsqrt.pop %v2152
        %v2185 = vrsqrt.pop %v2153
        %v2186 = vrsqrt.pop %v2154
        %v2187 = vrsqrt.pop %v2155
        %v2188 = vrsqrt.pop %v2156
        %v2189 = vrsqrt.pop %v2157
        %v2190 = vrsqrt.pop %v2158
        %v2191 = vrsqrt.pop %v2159
        %v2192 = vrsqrt.pop %v2160
        %v2193 = vrsqrt.pop %v2161
        %v2194 = vrsqrt.pop %v2162
        %v2195 = vrsqrt.pop %v2163
        %v2196 = vrsqrt.pop %v2164
        %v2197 = vrsqrt.pop %v2165
        %v2198 = vrsqrt.pop %v2166
        %v2199 = vrsqrt.pop %v2167
        %v2200 = vrsqrt.pop %v2168
        %v2201 = vrsqrt.pop %v2169
        %v2202 = vrsqrt.pop %v2170
        %v2203 = vrsqrt.pop %v2171
        %v2204 = vrsqrt.pop %v2172
        %v2205 = vrsqrt.pop %v2173
        %v2206 = vrsqrt.pop %v2174
        %v2207 = vrsqrt.pop %v2175
        %v2208 = vmul.f32 %v2112, %v2176
        %v2209 = vmul.f32 %v2113, %v2177
        %v2210 = vmul.f32 %v2114, %v2178
        %v2211 = vmul.f32 %v2115, %v2179
        %v2212 = vmul.f32 %v2116, %v2180
        %v2213 = vmul.f32 %v2117, %v2181
        %v2214 = vmul.f32 %v2118, %v2182
        %v2215 = vmul.f32 %v2119, %v2183
        %v2216 = vmul.f32 %v2120, %v2184
        %v2217 = vmul.f32 %v2121, %v2185
        %v2218 = vmul.f32 %v2122, %v2186
        %v2219 = vmul.f32 %v2123, %v2187
        %v2220 = vmul.f32 %v2124, %v2188
        %v2221 = vmul.f32 %v2125, %v2189
        %v2222 = vmul.f32 %v2126, %v2190
        %v2223 = vmul.f32 %v2127, %v2191
        %v2224 = vmul.f32 %v2128, %v2192
        %v2225 = vmul.f32 %v2129, %v2193
        %v2226 = vmul.f32 %v2130, %v2194
        %v2227 = vmul.f32 %v2131, %v2195
        %v2228 = vmul.f32 %v2132, %v2196
        %v2229 = vmul.f32 %v2133, %v2197
        %v2230 = vmul.f32 %v2134, %v2198
        %v2231 = vmul.f32 %v2135, %v2199
        %v2232 = vmul.f32 %v2136, %v2200
        %v2233 = vmul.f32 %v2137, %v2201
        %v2234 = vmul.f32 %v2138, %v2202
        %v2235 = vmul.f32 %v2139, %v2203
        %v2236 = vmul.f32 %v2140, %v2204
        %v2237 = vmul.f32 %v2141, %v2205
        %v2238 = vmul.f32 %v2142, %v2206
        %v2239 = vmul.f32 %v2143, %v2207
        %v2240 = vlaneseq
        %v2241 = vshrl.u32 %v2240, 7
        %v2242 = vsub.s32 1, %v2241
        %v2243 = vrot.slane %v337, %v2242
        %v2244 = vmul.f32 %v2208, %v2243
        %v2245 = vmul.f32 %v2209, %v2243
        %v2246 = vmul.f32 %v2210, %v2243
        %v2247 = vmul.f32 %v2211, %v2243
        %v2248 = vmul.f32 %v2212, %v2243
        %v2249 = vmul.f32 %v2213, %v2243
        %v2250 = vmul.f32 %v2214, %v2243
        %v2251 = vmul.f32 %v2215, %v2243
        %v2252 = vmul.f32 %v2216, %v2243
        %v2253 = vmul.f32 %v2217, %v2243
        %v2254 = vmul.f32 %v2218, %v2243
        %v2255 = vmul.f32 %v2219, %v2243
        %v2256 = vmul.f32 %v2220, %v2243
        %v2257 = vmul.f32 %v2221, %v2243
        %v2258 = vmul.f32 %v2222, %v2243
        %v2259 = vmul.f32 %v2223, %v2243
        %v2260 = vmul.f32 %v2224, %v2243
        %v2261 = vmul.f32 %v2225, %v2243
        %v2262 = vmul.f32 %v2226, %v2243
        %v2263 = vmul.f32 %v2227, %v2243
        %v2264 = vmul.f32 %v2228, %v2243
        %v2265 = vmul.f32 %v2229, %v2243
        %v2266 = vmul.f32 %v2230, %v2243
        %v2267 = vmul.f32 %v2231, %v2243
        %v2268 = vmul.f32 %v2232, %v2243
        %v2269 = vmul.f32 %v2233, %v2243
        %v2270 = vmul.f32 %v2234, %v2243
        %v2271 = vmul.f32 %v2235, %v2243
        %v2272 = vmul.f32 %v2236, %v2243
        %v2273 = vmul.f32 %v2237, %v2243
        %v2274 = vmul.f32 %v2238, %v2243
        %v2275 = vmul.f32 %v2239, %v2243
        %v2276 = vlaneseq
        %v2277 = vshrl.u32 %v2276, 7
        %v2278 = vsub.s32 2, %v2277
        %v2279 = vrot.slane %v337, %v2278
        %v2280 = vadd.f32 %v2244, %v2279
        %v2281 = vadd.f32 %v2245, %v2279
        %v2282 = vadd.f32 %v2246, %v2279
        %v2283 = vadd.f32 %v2247, %v2279
        %v2284 = vadd.f32 %v2248, %v2279
        %v2285 = vadd.f32 %v2249, %v2279
        %v2286 = vadd.f32 %v2250, %v2279
        %v2287 = vadd.f32 %v2251, %v2279
        %v2288 = vadd.f32 %v2252, %v2279
        %v2289 = vadd.f32 %v2253, %v2279
        %v2290 = vadd.f32 %v2254, %v2279
        %v2291 = vadd.f32 %v2255, %v2279
        %v2292 = vadd.f32 %v2256, %v2279
        %v2293 = vadd.f32 %v2257, %v2279
        %v2294 = vadd.f32 %v2258, %v2279
        %v2295 = vadd.f32 %v2259, %v2279
        %v2296 = vadd.f32 %v2260, %v2279
        %v2297 = vadd.f32 %v2261, %v2279
        %v2298 = vadd.f32 %v2262, %v2279
        %v2299 = vadd.f32 %v2263, %v2279
        %v2300 = vadd.f32 %v2264, %v2279
        %v2301 = vadd.f32 %v2265, %v2279
        %v2302 = vadd.f32 %v2266, %v2279
        %v2303 = vadd.f32 %v2267, %v2279
        %v2304 = vadd.f32 %v2268, %v2279
        %v2305 = vadd.f32 %v2269, %v2279
        %v2306 = vadd.f32 %v2270, %v2279
        %v2307 = vadd.f32 %v2271, %v2279
        %v2308 = vadd.f32 %v2272, %v2279
        %v2309 = vadd.f32 %v2273, %v2279
        %v2310 = vadd.f32 %v2274, %v2279
        %v2311 = vadd.f32 %v2275, %v2279
        %v2312 = vadd.f32 %v288, %v2280
        %v2313 = vadd.f32 %v289, %v2281
        %v2314 = vadd.f32 %v290, %v2282
        %v2315 = vadd.f32 %v291, %v2283
        %v2316 = vadd.f32 %v292, %v2284
        %v2317 = vadd.f32 %v293, %v2285
        %v2318 = vadd.f32 %v294, %v2286
        %v2319 = vadd.f32 %v295, %v2287
        %v2320 = vadd.f32 %v296, %v2288
        %v2321 = vadd.f32 %v297, %v2289
        %v2322 = vadd.f32 %v298, %v2290
        %v2323 = vadd.f32 %v299, %v2291
        %v2324 = vadd.f32 %v300, %v2292
        %v2325 = vadd.f32 %v301, %v2293
        %v2326 = vadd.f32 %v302, %v2294
        %v2327 = vadd.f32 %v303, %v2295
        %v2328 = vadd.f32 %v304, %v2296
        %v2329 = vadd.f32 %v305, %v2297
        %v2330 = vadd.f32 %v306, %v2298
        %v2331 = vadd.f32 %v307, %v2299
        %v2332 = vadd.f32 %v308, %v2300
        %v2333 = vadd.f32 %v309, %v2301
        %v2334 = vadd.f32 %v310, %v2302
        %v2335 = vadd.f32 %v311, %v2303
        %v2336 = vadd.f32 %v312, %v2304
        %v2337 = vadd.f32 %v313, %v2305
        %v2338 = vadd.f32 %v314, %v2306
        %v2339 = vadd.f32 %v315, %v2307
        %v2340 = vadd.f32 %v316, %v2308
        %v2341 = vadd.f32 %v317, %v2309
        %v2342 = vadd.f32 %v318, %v2310
        %v2343 = vadd.f32 %v319, %v2311
        %2344 = vst [vmem:[%s284] sm:$0xff] %v2312
        %2345 = vst [vmem:[%s284 + $0x8] sm:$0xff] %v2313
        %2346 = vst [vmem:[%s284 + $0x10] sm:$0xff] %v2314
        %2347 = vst [vmem:[%s284 + $0x18] sm:$0xff] %v2315
        %2348 = vst [vmem:[%s284 + $0x20] sm:$0xff] %v2316
        %2349 = vst [vmem:[%s284 + $0x28] sm:$0xff] %v2317
        %2350 = vst [vmem:[%s284 + $0x30] sm:$0xff] %v2318
        %2351 = vst [vmem:[%s284 + $0x38] sm:$0xff] %v2319
        %2352 = vst [vmem:[%s284 + $0x40] sm:$0xff] %v2320
        %2353 = vst [vmem:[%s284 + $0x48] sm:$0xff] %v2321
        %2354 = vst [vmem:[%s284 + $0x50] sm:$0xff] %v2322
        %2355 = vst [vmem:[%s284 + $0x58] sm:$0xff] %v2323
        %2356 = vst [vmem:[%s284 + $0x60] sm:$0xff] %v2324
        %2357 = vst [vmem:[%s284 + $0x68] sm:$0xff] %v2325
        %2358 = vst [vmem:[%s284 + $0x70] sm:$0xff] %v2326
        %2359 = vst [vmem:[%s284 + $0x78] sm:$0xff] %v2327
        %2360 = vst [vmem:[%s284 + $0x80] sm:$0xff] %v2328
        %2361 = vst [vmem:[%s284 + $0x88] sm:$0xff] %v2329
        %2362 = vst [vmem:[%s284 + $0x90] sm:$0xff] %v2330
        %2363 = vst [vmem:[%s284 + $0x98] sm:$0xff] %v2331
        %2364 = vst [vmem:[%s284 + $0xa0] sm:$0xff] %v2332
        %2365 = vst [vmem:[%s284 + $0xa8] sm:$0xff] %v2333
        %2366 = vst [vmem:[%s284 + $0xb0] sm:$0xff] %v2334
        %2367 = vst [vmem:[%s284 + $0xb8] sm:$0xff] %v2335
        %2368 = vst [vmem:[%s284 + $0xc0] sm:$0xff] %v2336
        %2369 = vst [vmem:[%s284 + $0xc8] sm:$0xff] %v2337
        %2370 = vst [vmem:[%s284 + $0xd0] sm:$0xff] %v2338
        %2371 = vst [vmem:[%s284 + $0xd8] sm:$0xff] %v2339
        %2372 = vst [vmem:[%s284 + $0xe0] sm:$0xff] %v2340
        %2373 = vst [vmem:[%s284 + $0xe8] sm:$0xff] %v2341
        %2374 = vst [vmem:[%s284 + $0xf0] sm:$0xff] %v2342
        %2375 = vst [vmem:[%s284 + $0xf8] sm:$0xff] %v2343
        %s2376 = sand.u32 %s142, 1
        %s2377 = scalar_lea.sflag [#allocation4], %s2376
        %s2378 = sand.u32 %s142, 1
        %s2379 = smul.addr %s2378, 256
        %s2380 = scalar_lea.vmem [#allocation10], %s2379
        // Predicated region
        $region57: #{tpu_custom_call.1} parent=39 // pred_check
          %p2381 = pneg %p152
        $region58: #{tpu_custom_call.1} parent=39 // pred_check_branch
          %2383 = sbr.rel (%p2381) target = $region60
        $region59: #{tpu_custom_call.1} parent=39 // pred_region
          %s2384 = smul.u32 32, %s24
          %s2386 = ssub.s32 4096, 4096
          %2387 = vsyncadd %s2377, %s2386
          %s2388 = smul.addr %s2384, 128
          %s2389 = scalar_lea.hbm %s5, %s2388
          %s2390 = sshll.u32 %s2380, 4
          %s2391 = int_to_ptr.vmem [resolvable:$true] %s2390
          %2396 = dma.vmem_to_hbm [thread:$0]  %s2391, 4096, %s2389, %s2377, 128, 128, 8
        $region60: #{tpu_custom_call.1} parent=39 // pred_fallthru
          _
      $region40: #{tpu_custom_call.1} parent=5 // pred_fallthru
        _
      %p2397 = scmp.le.s32.totalorder 2, %s19
      // Predicated region
      $region61: #{tpu_custom_call.1} parent=5 // pred_check
        %p2398 = pneg %p2397
      $region62: #{tpu_custom_call.1} parent=5 // pred_check_branch
        %2400 = sbr.rel (%p2398) target = $region64
      $region63: #{tpu_custom_call.1} parent=5 // pred_region
        %s2401 = ssub.s32 %s19, 2
        // Predicated region
        $region65: #{tpu_custom_call.1} parent=63 // pred_check
          %p2402 = pneg %p158
        $region66: #{tpu_custom_call.1} parent=63 // pred_check_branch
          %2404 = sbr.rel (%p2402) target = $region68
        $region67: #{tpu_custom_call.1} parent=63 // pred_region
          %s2405 = sand.u32 %s143, 1
          %s2406 = scalar_lea.sflag [#allocation4], %s2405
          %s2407 = sand.u32 %s143, 1
          %s2408 = smul.addr %s2407, 256
          %s2409 = scalar_lea.vmem [#allocation10], %s2408
          %2410 = dma.done %s2406, 4096
        $region68: #{tpu_custom_call.1} parent=63 // pred_fallthru
          _
      $region64: #{tpu_custom_call.1} parent=5 // pred_fallthru
        _
    $region6: #{tpu_custom_call.1} parent=1 // loop_footer
      %s23 = sadd.s32 1, %s19
    $region7: #{tpu_custom_call.1} parent=1 // loop_footer_branch
      %18 = sbr.rel target = $region3
    $region8: #{tpu_custom_call.1} parent=1 // loop_exit
      _
    %2411 = vsyncpa [#allocation3], 1
    %s2412 = scalar_lea.sflag [#allocation3], 1
    %2413 = vsyncpa %s2412, 1
    %2414 = vsyncpa [#allocation6], 1
    %2415 = vsyncpa [#allocation9], 1
    %2416 = vsyncpa [#allocation4], 1
    %s2417 = scalar_lea.sflag [#allocation4], 1
    %2418 = vsyncpa %s2417, 1

</llo_original>
